<compile_context>
chip_gen: v5e
topology: v5e:2x2
jax: 0.10.0
libtpu: 0.0.40
codegen_flags: <defaults>
</compile_context>

<pallas_src>
import numpy as np
import jax
import jax.numpy as jnp
from jax import lax
from jax.experimental import pallas as pl
from jax.experimental.pallas import tpu as pltpu

# ---------------- OFDM configuration (mirrors `opt` of the PyTorch module) ---
N = 2            # batch size
P = 1            # packets / antenna groups
M = 64           # subcarriers (FFT size)
K = 16           # cyclic prefix length
L = 8            # channel taps
DECAY = 4.0      # tap power decay
N_PILOT = 1      # pilot OFDM symbols
S = 4            # size_latent (data OFDM symbols)
PWR = 1.0        # normalization power
SNR = 10.0       # dB

NP = N * P                       # flattened batch rows            = 2
NSYM = S + N_PILOT               # OFDM symbols per packet         = 5
MK = M + K                       # samples per CP'd symbol         = 80
SMK = NSYM * MK                  # TX time samples per (N,P)       = 400
DATA_LEN = S * MK                # data-only CP'd samples          = 320
CONV_LEN = SMK + L - 1           # multipath conv output length    = 407
TWO_M = 2 * M                    # packed complex row width        = 128
ROWS = 16                        # 8 rows per batch group
GRP = ROWS // NP                 # rows per batch group            = 8

# ---------------- baked constants (packed real block matrices) ---------------
_k = np.arange(M)
_ANG = 2.0 * np.pi * np.outer(_k, _k) / M
_DFT_R = np.cos(_ANG).astype(np.float32)               # exp(-2*pi*i*n*k/M) real
_DFT_I = (-np.sin(_ANG)).astype(np.float32)            # exp(-2*pi*i*n*k/M) imag
# [Yr | Yi] = [Xr | Xi] @ [[Wr, Wi], [-Wi, Wr]]   (torch.fft convention)
W2_DFT = np.block([[_DFT_R, _DFT_I], [-_DFT_I, _DFT_R]]).astype(np.float32)   # (128,128)

# packed IDFT + cyclic prefix: [xr_cp(80) pad | xi_cp(80) pad] = [Xr|Xi] @ W_IDFT_CP
_m_cp = np.concatenate([np.arange(M - K, M), np.arange(M)])        # CP then body (80,)
_ANG_CP = 2.0 * np.pi * np.outer(_k, _m_cp) / M                    # (64, 80), [k, t]
_C = (np.cos(_ANG_CP) / M).astype(np.float32)
_SN = (np.sin(_ANG_CP) / M).astype(np.float32)
W_IDFT_CP = np.zeros((TWO_M, 2 * TWO_M), np.float32)               # (128, 256), 128 KiB
W_IDFT_CP[:M, :MK] = _C
W_IDFT_CP[M:, :MK] = -_SN
W_IDFT_CP[:M, TWO_M:TWO_M + MK] = _SN
W_IDFT_CP[M:, TWO_M:TWO_M + MK] = _C


# =============================== fused Pallas kernel =========================
def _ofdm_kernel(snr_ref, cof_ref, z_ref, eps_ref, cofp_ref, wdft_ref, widft_ref,
                 rx_ref, misc_ref):
    f32 = jnp.float32
    row_id = lax.broadcasted_iota(jnp.int32, (ROWS, TWO_M), 0)
    lane_id = lax.broadcasted_iota(jnp.int32, (ROWS, TWO_M), 1)
    b0_mask = row_id < GRP                                  # batch-0 rows (NP == 2)

    # ---- Normalize() per OFDM symbol row (pilot + data; pad rows stay 0) ----
    z = z_ref[...]                                          # (16,128) packed [re|im]
    power = jnp.mean(z * z, axis=-1, keepdims=True)         # mean over (M,2) per symbol
    alpha = np.float32(np.sqrt(PWR / 2.0)) * lax.rsqrt(jnp.maximum(power, 1e-30))
    zn = alpha * z

    # ---- batched IFFT + cyclic prefix: one 80-sample CP'd block per row ----
    zt = jnp.dot(zn, widft_ref[...], preferred_element_type=f32)   # (16,256)
    xr = zt[:, :TWO_M]                                      # time (real); lanes 80..127 == 0
    xi = zt[:, TWO_M:]                                      # time (imag)

    # ---- PAPR source: |x|^2 of the CP'd symbols (data rows selected below) ----
    amp2 = xr * xr + xi * xi                                # (16,128)

    # ---- multipath convolution in the folded layout (taps as SMEM scalars) ----
    # per-block conv y_main[r,n] = sum_l h_l x_r[n-l]; lanes 80..86 hold the spill
    yr = jnp.zeros((ROWS, TWO_M), f32)
    yi = jnp.zeros((ROWS, TWO_M), f32)
    for l in range(L):
        hr = jnp.where(b0_mask, cof_ref[l], cof_ref[2 * L + l])            # (16,128)
        hi = jnp.where(b0_mask, cof_ref[L + l], cof_ref[3 * L + l])
        if l == 0:
            xr_s, xi_s = xr, xi
        else:   # shift right by l; wrapped lanes come from the zero tail -> zero fill
            xr_s = jnp.concatenate([xr[:, TWO_M - l:], xr[:, :TWO_M - l]], axis=1)
            xi_s = jnp.concatenate([xi[:, TWO_M - l:], xi[:, :TWO_M - l]], axis=1)
        yr = yr + hr * xr_s - hi * xi_s
        yi = yi + hr * xi_s + hi * xr_s

    # full linear-conv energy = sum |y_main|^2 + 2 * (halo cross terms)
    prev_r = jnp.concatenate([yr[ROWS - 1:, :], yr[:ROWS - 1, :]], axis=0)  # previous block
    prev_i = jnp.concatenate([yi[ROWS - 1:, :], yi[:ROWS - 1, :]], axis=0)
    halo_r = jnp.concatenate([prev_r[:, MK:], prev_r[:, :MK]], axis=1)      # spill lanes -> 0..
    halo_i = jnp.concatenate([prev_i[:, MK:], prev_i[:, :MK]], axis=1)
    cross = jnp.where(lane_id < L - 1, yr * halo_r + yi * halo_i, 0.0)
    e_tot = yr * yr + yi * yi + 2.0 * cross                 # (16,128)

    # ---- per-batch scalar stats ('ins' SNR calculation) ----
    snr_col = jnp.full((1, 1), snr_ref[0], dtype=f32)
    nfac = jnp.exp(snr_col * np.float32(-np.log(10.0) / 10.0))      # 10^(-SNR/10)
    pwr_list, npwr_list, nstd_list, papr_list = [], [], [], []
    for b in range(NP):
        in_b = (row_id >= GRP * b) & (row_id < GRP * (b + 1))
        is_data = (row_id >= GRP * b + N_PILOT) & (row_id < GRP * b + NSYM)
        a2 = jnp.where(is_data, amp2, 0.0)
        tx_mean = jnp.full((1, 1), jnp.sum(a2), f32) * np.float32(1.0 / DATA_LEN)
        tx_max = jnp.full((1, 1), jnp.max(a2), f32)
        papr_list.append(tx_max / tx_mean)
        pwr_b = jnp.full((1, 1), jnp.sum(jnp.where(in_b, e_tot, 0.0)), f32) \
            * np.float32(1.0 / CONV_LEN)
        pwr_list.append(pwr_b)
        npwr_b = pwr_b * nfac
        npwr_list.append(npwr_b)
        nstd_list.append(jnp.sqrt(npwr_b * 0.5))
    nstd16 = jnp.where(b0_mask[:, :1], nstd_list[0], nstd_list[1])          # (16,1)

    # ---- RX frequency domain: FFT(conv + noise, CP removed) == H ⊙ Zn + std*DFT(eps)
    h = jnp.dot(cofp_ref[...], wdft_ref[...], preferred_element_type=f32)   # (2,128) = [Hr|Hi]
    h16 = jnp.where(b0_mask, h[0:1, :], h[1:2, :])                          # batch-broadcast
    h16s = jnp.concatenate([h16[:, M:], h16[:, :M]], axis=1)                # [Hi|Hr]
    lane_lo = lane_id < M
    ha = jnp.where(lane_lo, h16, h16s)                                      # [Hr|Hr]
    hb = jnp.where(lane_lo, -h16s, h16)                                     # [-Hi|Hi]
    zswap = jnp.concatenate([zn[:, M:], zn[:, :M]], axis=1)                 # [Zi|Zr]
    e_freq = jnp.dot(eps_ref[...], wdft_ref[...], preferred_element_type=f32)
    rx_ref[...] = ha * zn + hb * zswap + nstd16 * e_freq                    # one dense store

    # ---- one lane-dense (2,256) store: [H_true | pwr, noise_pwr, PAPR, 0...] ----
    stats = jnp.concatenate([jnp.concatenate(pwr_list, axis=0),
                             jnp.concatenate(npwr_list, axis=0),
                             jnp.concatenate(papr_list, axis=0),
                             jnp.zeros((NP, TWO_M - 3), f32)], axis=1)
    misc_ref[...] = jnp.concatenate([h, stats], axis=1)


def _spec2(shape):
    return pl.BlockSpec(shape, lambda i: (0, 0))


_SMEM = pl.BlockSpec(memory_space=pltpu.MemorySpace.SMEM)

_fused_ofdm = pl.pallas_call(
    _ofdm_kernel,
    grid=(1,),
    in_specs=[
        _SMEM,                                  # SNR scalar (1,)
        _SMEM,                                  # channel taps (32,) [b][re(8),im(8)]
        _spec2((ROWS, TWO_M)),                  # frequency symbols, folded rows
        _spec2((ROWS, TWO_M)),                  # CP-removed noise draws, folded rows
        _spec2((NP, TWO_M)),                    # packed zero-padded taps
        _spec2((TWO_M, TWO_M)),                 # packed DFT matrix      (64 KiB)
        _spec2((TWO_M, 2 * TWO_M)),             # packed IDFT+CP matrix  (128 KiB)
    ],
    out_specs=[_spec2((ROWS, TWO_M)), _spec2((NP, 2 * TWO_M))],
    out_shape=[jax.ShapeDtypeStruct((ROWS, TWO_M), jnp.float32),
               jax.ShapeDtypeStruct((NP, 2 * TWO_M), jnp.float32)],
    compiler_params=pltpu.CompilerParams(dimension_semantics=("arbitrary",)),
)


# ================================ forward pass ===============================
def ofdm_channel_forward(x, snr, pilot_freq, cof, noise_eps):
    """x: (N,P,S,M,2); snr: scalar dB; pilot_freq: (M,2); cof: (N,P,L,2);
    noise_eps: (N,P,SMK+L-1,2) std-normal draws (replaces torch.randn_like(y)).
    The wrapper does layout only (transpose/reshape/concat) - no arithmetic."""
    f32 = jnp.float32

    # frequency-domain symbol rows, 8 per batch: [pilot, d0..d3, 0, 0, 0]
    xp = jnp.transpose(x, (0, 1, 2, 4, 3)).reshape(NP, S, TWO_M)
    pil = jnp.transpose(pilot_freq, (1, 0)).reshape(1, TWO_M)
    pad3 = jnp.zeros((GRP - NSYM, TWO_M), f32)

    # CP-removed noise slices at the exact sample positions the receiver keeps
    eps_sym = noise_eps[:, :, :SMK].reshape(N, P, NSYM, MK, 2)[..., K:, :]
    eps_p = jnp.transpose(eps_sym, (0, 1, 2, 4, 3)).reshape(NP, NSYM, TWO_M)

    zrows, erows = [], []
    for b in range(NP):
        zrows += [pil, xp[b], pad3]
        erows += [eps_p[b], pad3]
    z16 = jnp.concatenate(zrows, axis=0)                       # (16,128)
    eps16 = jnp.concatenate(erows, axis=0)                     # (16,128)

    cof_r = cof[..., 0].reshape(NP, L)
    cof_i = cof[..., 1].reshape(NP, L)
    zlm = jnp.zeros((NP, M - L), f32)
    cofp = jnp.concatenate([cof_r, zlm, cof_i, zlm], axis=1)   # (2,128) packed taps
    cof_s = jnp.concatenate([cof_r, cof_i], axis=1).reshape(-1)  # (32,) SMEM scalars

    snr_arr = jnp.asarray(snr, f32).reshape(1)

    rx, misc = _fused_ofdm(snr_arr, cof_s, z16, eps16, cofp,
                           jnp.asarray(W2_DFT), jnp.asarray(W_IDFT_CP))

    # ---- unpack lane-dense kernel outputs back to the (..., 2) convention ----
    out = jnp.transpose(rx.reshape(NP, GRP, 2, M), (0, 1, 3, 2)).reshape(N, P, GRP, M, 2)
    info_pilot = out[:, :, :N_PILOT]
    info_sig = out[:, :, N_PILOT:NSYM]
    H_true = jnp.transpose(misc[:, :TWO_M].reshape(NP, 2, M), (0, 2, 1)).reshape(N, P, M, 2)
    pwr = misc[:, TWO_M].reshape(N, P, 1, 1)
    noise_pwr = misc[:, TWO_M + 1].reshape(N, P, 1, 1)
    PAPR = misc[:, TWO_M + 2].reshape(N, P)
    return info_pilot, info_sig, H_true, noise_pwr, PAPR, None, pwr


# ==================================== main ===================================
if __name__ == "__main__":
    key = jax.random.PRNGKey(0)
    k1, k2, k3, k4 = jax.random.split(key, 4)

    # deterministic synthetic inputs / "parameters"
    x = jax.random.normal(k1, (N, P, S, M, 2), jnp.float32)
    pilot_freq = jax.random.normal(k2, (M, 2), jnp.float32)       # stands in for lts_freq.pt
    taps = np.exp(-np.arange(L, dtype=np.float32) / DECAY)
    taps = taps / taps.sum()
    tap_power = jnp.asarray(taps).reshape(1, 1, L, 1)
    cof = jnp.sqrt(tap_power / 2.0) * jax.random.normal(k3, (N, P, L, 2), jnp.float32)
    noise_eps = jax.random.normal(k4, (N, P, CONV_LEN, 2), jnp.float32)

    fwd = jax.jit(ofdm_channel_forward)
    info_pilot, info_sig, H_true, noise_pwr, PAPR, _, pwr = fwd(
        x, jnp.float32(SNR), pilot_freq, cof, noise_eps)
    jax.block_until_ready((info_pilot, info_sig, H_true, noise_pwr, PAPR, pwr))

    assert info_pilot.shape == (N, P, N_PILOT, M, 2)
    assert info_sig.shape == (N, P, S, M, 2)
    assert H_true.shape == (N, P, M, 2)
    assert noise_pwr.shape == (N, P, 1, 1)
    assert PAPR.shape == (N, P)
    assert pwr.shape == (N, P, 1, 1)
    assert bool(jnp.all(jnp.isfinite(info_sig))) and bool(jnp.all(jnp.isfinite(noise_pwr)))
    print("KERNEL_OK")
</pallas_src>

<mosaic_0001>
module attributes {stable_mosaic.version = 11 : i64} {
  func.func @_ofdm_kernel(%arg0: i32, %arg1: memref<1xf32, #tpu.memory_space<smem>>, %arg2: memref<32xf32, #tpu.memory_space<smem>>, %arg3: memref<16x128xf32, #tpu.memory_space<vmem>>, %arg4: memref<16x128xf32, #tpu.memory_space<vmem>>, %arg5: memref<2x128xf32, #tpu.memory_space<vmem>>, %arg6: memref<128x128xf32, #tpu.memory_space<vmem>>, %arg7: memref<128x256xf32, #tpu.memory_space<vmem>>, %arg8: memref<16x128xf32, #tpu.memory_space<vmem>>, %arg9: memref<2x256xf32, #tpu.memory_space<vmem>>) attributes {dimension_semantics = [#tpu.dimension_semantics<arbitrary>], iteration_bounds = array<i64: 1>, scalar_prefetch = 0 : i64, scratch_operands = 0 : i64, tpu.core_type = #tpu.core_type<tc>, window_params = [{transform_indices = @transform_0, window_bounds = array<i64: 1>}, {transform_indices = @transform_1, window_bounds = array<i64: 32>}, {pipeline_mode = #tpu.pipeline_mode<synchronous>, transform_indices = @transform_2, window_bounds = array<i64: 16, 128>}, {pipeline_mode = #tpu.pipeline_mode<synchronous>, transform_indices = @transform_3, window_bounds = array<i64: 16, 128>}, {pipeline_mode = #tpu.pipeline_mode<synchronous>, transform_indices = @transform_4, window_bounds = array<i64: 2, 128>}, {pipeline_mode = #tpu.pipeline_mode<synchronous>, transform_indices = @transform_5, window_bounds = array<i64: 128, 128>}, {pipeline_mode = #tpu.pipeline_mode<synchronous>, transform_indices = @transform_6, window_bounds = array<i64: 128, 256>}, {pipeline_mode = #tpu.pipeline_mode<synchronous>, transform_indices = @transform_7, window_bounds = array<i64: 16, 128>}, {pipeline_mode = #tpu.pipeline_mode<synchronous>, transform_indices = @transform_8, window_bounds = array<i64: 2, 256>}]} {
    %0 = tpu.iota {dimensions = array<i32: 0>} : vector<16x128xi32>
    %1 = tpu.iota {dimensions = array<i32: 1>} : vector<16x128xi32>
    %c8_i32 = arith.constant 8 : i32
    %2 = vector.broadcast %c8_i32 : i32 to vector<16x128xi32>
    %3 = arith.cmpi slt, %0, %2 : vector<16x128xi32>
    %c0 = arith.constant 0 : index
    %c0_0 = arith.constant 0 : index
    %4 = vector.load %arg3[%c0, %c0_0] : memref<16x128xf32, #tpu.memory_space<vmem>>, vector<16x128xf32>
    %5 = arith.mulf %4, %4 : vector<16x128xf32>
    %cst = arith.constant dense<0.000000e+00> : vector<16xf32>
    %6 = vector.multi_reduction <add>, %5, %cst [1] : vector<16x128xf32> to vector<16xf32>
    %7 = vector.shape_cast %6 : vector<16xf32> to vector<16x1xf32>
    %cst_1 = arith.constant 1.280000e+02 : f32
    %8 = vector.broadcast %cst_1 : f32 to vector<16x1xf32>
    %9 = arith.divf %7, %8 : vector<16x1xf32>
    %cst_2 = arith.constant 1.000000e-30 : f32
    %10 = vector.broadcast %cst_2 : f32 to vector<16x1xf32>
    %11 = arith.maximumf %9, %10 : vector<16x1xf32>
    %12 = math.rsqrt %11 : vector<16x1xf32>
    %cst_3 = arith.constant 0.707106769 : f32
    %13 = vector.broadcast %cst_3 : f32 to vector<16x1xf32>
    %14 = arith.mulf %13, %12 : vector<16x1xf32>
    %15 = vector.broadcast %14 : vector<16x1xf32> to vector<16x128xf32>
    %16 = arith.mulf %15, %4 : vector<16x128xf32>
    %c0_4 = arith.constant 0 : index
    %c0_5 = arith.constant 0 : index
    %17 = vector.load %arg7[%c0_4, %c0_5] : memref<128x256xf32, #tpu.memory_space<vmem>>, vector<128x256xf32>
    %cst_6 = arith.constant dense<0.000000e+00> : vector<16x256xf32>
    %18 = tpu.matmul %16, %17, %cst_6 {dimension_numbers = #tpu.dot_dimension_numbers<[1], [0], [0], [1], [0, 0, 1, 1], [], []>} : vector<16x128xf32>, vector<128x256xf32>, vector<16x256xf32> -> vector<16x256xf32>
    %19 = vector.extract_strided_slice %18 {offsets = [0, 0], sizes = [16, 128], strides = [1, 1]} : vector<16x256xf32> to vector<16x128xf32>
    %20 = vector.extract_strided_slice %18 {offsets = [0, 128], sizes = [16, 128], strides = [1, 1]} : vector<16x256xf32> to vector<16x128xf32>
    %21 = arith.mulf %19, %19 : vector<16x128xf32>
    %22 = arith.mulf %20, %20 : vector<16x128xf32>
    %23 = arith.addf %21, %22 : vector<16x128xf32>
    %cst_7 = arith.constant 0.000000e+00 : f32
    %24 = vector.broadcast %cst_7 : f32 to vector<16x128xf32>
    %cst_8 = arith.constant 0.000000e+00 : f32
    %25 = vector.broadcast %cst_8 : f32 to vector<16x128xf32>
    %c0_9 = arith.constant 0 : index
    %26 = memref.load %arg2[%c0_9] : memref<32xf32, #tpu.memory_space<smem>>
    %c16 = arith.constant 16 : index
    %27 = memref.load %arg2[%c16] : memref<32xf32, #tpu.memory_space<smem>>
    %28 = vector.broadcast %26 : f32 to vector<16x128xf32>
    %29 = vector.broadcast %27 : f32 to vector<16x128xf32>
    %30 = arith.select %3, %28, %29 : vector<16x128xi1>, vector<16x128xf32>
    %c8 = arith.constant 8 : index
    %31 = memref.load %arg2[%c8] : memref<32xf32, #tpu.memory_space<smem>>
    %c24 = arith.constant 24 : index
    %32 = memref.load %arg2[%c24] : memref<32xf32, #tpu.memory_space<smem>>
    %33 = vector.broadcast %31 : f32 to vector<16x128xf32>
    %34 = vector.broadcast %32 : f32 to vector<16x128xf32>
    %35 = arith.select %3, %33, %34 : vector<16x128xi1>, vector<16x128xf32>
    %36 = arith.mulf %30, %19 : vector<16x128xf32>
    %37 = arith.addf %24, %36 : vector<16x128xf32>
    %38 = arith.mulf %35, %20 : vector<16x128xf32>
    %39 = arith.subf %37, %38 : vector<16x128xf32>
    %40 = arith.mulf %30, %20 : vector<16x128xf32>
    %41 = arith.addf %25, %40 : vector<16x128xf32>
    %42 = arith.mulf %35, %19 : vector<16x128xf32>
    %43 = arith.addf %41, %42 : vector<16x128xf32>
    %c1 = arith.constant 1 : index
    %44 = memref.load %arg2[%c1] : memref<32xf32, #tpu.memory_space<smem>>
    %c17 = arith.constant 17 : index
    %45 = memref.load %arg2[%c17] : memref<32xf32, #tpu.memory_space<smem>>
    %46 = vector.broadcast %44 : f32 to vector<16x128xf32>
    %47 = vector.broadcast %45 : f32 to vector<16x128xf32>
    %48 = arith.select %3, %46, %47 : vector<16x128xi1>, vector<16x128xf32>
    %c9 = arith.constant 9 : index
    %49 = memref.load %arg2[%c9] : memref<32xf32, #tpu.memory_space<smem>>
    %c25 = arith.constant 25 : index
    %50 = memref.load %arg2[%c25] : memref<32xf32, #tpu.memory_space<smem>>
    %51 = vector.broadcast %49 : f32 to vector<16x128xf32>
    %52 = vector.broadcast %50 : f32 to vector<16x128xf32>
    %53 = arith.select %3, %51, %52 : vector<16x128xi1>, vector<16x128xf32>
    %54 = vector.extract_strided_slice %19 {offsets = [0, 127], sizes = [16, 1], strides = [1, 1]} : vector<16x128xf32> to vector<16x1xf32>
    %55 = vector.extract_strided_slice %19 {offsets = [0, 0], sizes = [16, 127], strides = [1, 1]} : vector<16x128xf32> to vector<16x127xf32>
    %56 = tpu.concatenate %54, %55 in 1 : vector<16x1xf32>, vector<16x127xf32> -> vector<16x128xf32>
    %57 = vector.extract_strided_slice %20 {offsets = [0, 127], sizes = [16, 1], strides = [1, 1]} : vector<16x128xf32> to vector<16x1xf32>
    %58 = vector.extract_strided_slice %20 {offsets = [0, 0], sizes = [16, 127], strides = [1, 1]} : vector<16x128xf32> to vector<16x127xf32>
    %59 = tpu.concatenate %57, %58 in 1 : vector<16x1xf32>, vector<16x127xf32> -> vector<16x128xf32>
    %60 = arith.mulf %48, %56 : vector<16x128xf32>
    %61 = arith.addf %39, %60 : vector<16x128xf32>
    %62 = arith.mulf %53, %59 : vector<16x128xf32>
    %63 = arith.subf %61, %62 : vector<16x128xf32>
    %64 = arith.mulf %48, %59 : vector<16x128xf32>
    %65 = arith.addf %43, %64 : vector<16x128xf32>
    %66 = arith.mulf %53, %56 : vector<16x128xf32>
    %67 = arith.addf %65, %66 : vector<16x128xf32>
    %c2 = arith.constant 2 : index
    %68 = memref.load %arg2[%c2] : memref<32xf32, #tpu.memory_space<smem>>
    %c18 = arith.constant 18 : index
    %69 = memref.load %arg2[%c18] : memref<32xf32, #tpu.memory_space<smem>>
    %70 = vector.broadcast %68 : f32 to vector<16x128xf32>
    %71 = vector.broadcast %69 : f32 to vector<16x128xf32>
    %72 = arith.select %3, %70, %71 : vector<16x128xi1>, vector<16x128xf32>
    %c10 = arith.constant 10 : index
    %73 = memref.load %arg2[%c10] : memref<32xf32, #tpu.memory_space<smem>>
    %c26 = arith.constant 26 : index
    %74 = memref.load %arg2[%c26] : memref<32xf32, #tpu.memory_space<smem>>
    %75 = vector.broadcast %73 : f32 to vector<16x128xf32>
    %76 = vector.broadcast %74 : f32 to vector<16x128xf32>
    %77 = arith.select %3, %75, %76 : vector<16x128xi1>, vector<16x128xf32>
    %78 = vector.extract_strided_slice %19 {offsets = [0, 126], sizes = [16, 2], strides = [1, 1]} : vector<16x128xf32> to vector<16x2xf32>
    %79 = vector.extract_strided_slice %19 {offsets = [0, 0], sizes = [16, 126], strides = [1, 1]} : vector<16x128xf32> to vector<16x126xf32>
    %80 = tpu.concatenate %78, %79 in 1 : vector<16x2xf32>, vector<16x126xf32> -> vector<16x128xf32>
    %81 = vector.extract_strided_slice %20 {offsets = [0, 126], sizes = [16, 2], strides = [1, 1]} : vector<16x128xf32> to vector<16x2xf32>
    %82 = vector.extract_strided_slice %20 {offsets = [0, 0], sizes = [16, 126], strides = [1, 1]} : vector<16x128xf32> to vector<16x126xf32>
    %83 = tpu.concatenate %81, %82 in 1 : vector<16x2xf32>, vector<16x126xf32> -> vector<16x128xf32>
    %84 = arith.mulf %72, %80 : vector<16x128xf32>
    %85 = arith.addf %63, %84 : vector<16x128xf32>
    %86 = arith.mulf %77, %83 : vector<16x128xf32>
    %87 = arith.subf %85, %86 : vector<16x128xf32>
    %88 = arith.mulf %72, %83 : vector<16x128xf32>
    %89 = arith.addf %67, %88 : vector<16x128xf32>
    %90 = arith.mulf %77, %80 : vector<16x128xf32>
    %91 = arith.addf %89, %90 : vector<16x128xf32>
    %c3 = arith.constant 3 : index
    %92 = memref.load %arg2[%c3] : memref<32xf32, #tpu.memory_space<smem>>
    %c19 = arith.constant 19 : index
    %93 = memref.load %arg2[%c19] : memref<32xf32, #tpu.memory_space<smem>>
    %94 = vector.broadcast %92 : f32 to vector<16x128xf32>
    %95 = vector.broadcast %93 : f32 to vector<16x128xf32>
    %96 = arith.select %3, %94, %95 : vector<16x128xi1>, vector<16x128xf32>
    %c11 = arith.constant 11 : index
    %97 = memref.load %arg2[%c11] : memref<32xf32, #tpu.memory_space<smem>>
    %c27 = arith.constant 27 : index
    %98 = memref.load %arg2[%c27] : memref<32xf32, #tpu.memory_space<smem>>
    %99 = vector.broadcast %97 : f32 to vector<16x128xf32>
    %100 = vector.broadcast %98 : f32 to vector<16x128xf32>
    %101 = arith.select %3, %99, %100 : vector<16x128xi1>, vector<16x128xf32>
    %102 = vector.extract_strided_slice %19 {offsets = [0, 125], sizes = [16, 3], strides = [1, 1]} : vector<16x128xf32> to vector<16x3xf32>
    %103 = vector.extract_strided_slice %19 {offsets = [0, 0], sizes = [16, 125], strides = [1, 1]} : vector<16x128xf32> to vector<16x125xf32>
    %104 = tpu.concatenate %102, %103 in 1 : vector<16x3xf32>, vector<16x125xf32> -> vector<16x128xf32>
    %105 = vector.extract_strided_slice %20 {offsets = [0, 125], sizes = [16, 3], strides = [1, 1]} : vector<16x128xf32> to vector<16x3xf32>
    %106 = vector.extract_strided_slice %20 {offsets = [0, 0], sizes = [16, 125], strides = [1, 1]} : vector<16x128xf32> to vector<16x125xf32>
    %107 = tpu.concatenate %105, %106 in 1 : vector<16x3xf32>, vector<16x125xf32> -> vector<16x128xf32>
    %108 = arith.mulf %96, %104 : vector<16x128xf32>
    %109 = arith.addf %87, %108 : vector<16x128xf32>
    %110 = arith.mulf %101, %107 : vector<16x128xf32>
    %111 = arith.subf %109, %110 : vector<16x128xf32>
    %112 = arith.mulf %96, %107 : vector<16x128xf32>
    %113 = arith.addf %91, %112 : vector<16x128xf32>
    %114 = arith.mulf %101, %104 : vector<16x128xf32>
    %115 = arith.addf %113, %114 : vector<16x128xf32>
    %c4 = arith.constant 4 : index
    %116 = memref.load %arg2[%c4] : memref<32xf32, #tpu.memory_space<smem>>
    %c20 = arith.constant 20 : index
    %117 = memref.load %arg2[%c20] : memref<32xf32, #tpu.memory_space<smem>>
    %118 = vector.broadcast %116 : f32 to vector<16x128xf32>
    %119 = vector.broadcast %117 : f32 to vector<16x128xf32>
    %120 = arith.select %3, %118, %119 : vector<16x128xi1>, vector<16x128xf32>
    %c12 = arith.constant 12 : index
    %121 = memref.load %arg2[%c12] : memref<32xf32, #tpu.memory_space<smem>>
    %c28 = arith.constant 28 : index
    %122 = memref.load %arg2[%c28] : memref<32xf32, #tpu.memory_space<smem>>
    %123 = vector.broadcast %121 : f32 to vector<16x128xf32>
    %124 = vector.broadcast %122 : f32 to vector<16x128xf32>
    %125 = arith.select %3, %123, %124 : vector<16x128xi1>, vector<16x128xf32>
    %126 = vector.extract_strided_slice %19 {offsets = [0, 124], sizes = [16, 4], strides = [1, 1]} : vector<16x128xf32> to vector<16x4xf32>
    %127 = vector.extract_strided_slice %19 {offsets = [0, 0], sizes = [16, 124], strides = [1, 1]} : vector<16x128xf32> to vector<16x124xf32>
    %128 = tpu.concatenate %126, %127 in 1 : vector<16x4xf32>, vector<16x124xf32> -> vector<16x128xf32>
    %129 = vector.extract_strided_slice %20 {offsets = [0, 124], sizes = [16, 4], strides = [1, 1]} : vector<16x128xf32> to vector<16x4xf32>
    %130 = vector.extract_strided_slice %20 {offsets = [0, 0], sizes = [16, 124], strides = [1, 1]} : vector<16x128xf32> to vector<16x124xf32>
    %131 = tpu.concatenate %129, %130 in 1 : vector<16x4xf32>, vector<16x124xf32> -> vector<16x128xf32>
    %132 = arith.mulf %120, %128 : vector<16x128xf32>
    %133 = arith.addf %111, %132 : vector<16x128xf32>
    %134 = arith.mulf %125, %131 : vector<16x128xf32>
    %135 = arith.subf %133, %134 : vector<16x128xf32>
    %136 = arith.mulf %120, %131 : vector<16x128xf32>
    %137 = arith.addf %115, %136 : vector<16x128xf32>
    %138 = arith.mulf %125, %128 : vector<16x128xf32>
    %139 = arith.addf %137, %138 : vector<16x128xf32>
    %c5 = arith.constant 5 : index
    %140 = memref.load %arg2[%c5] : memref<32xf32, #tpu.memory_space<smem>>
    %c21 = arith.constant 21 : index
    %141 = memref.load %arg2[%c21] : memref<32xf32, #tpu.memory_space<smem>>
    %142 = vector.broadcast %140 : f32 to vector<16x128xf32>
    %143 = vector.broadcast %141 : f32 to vector<16x128xf32>
    %144 = arith.select %3, %142, %143 : vector<16x128xi1>, vector<16x128xf32>
    %c13 = arith.constant 13 : index
    %145 = memref.load %arg2[%c13] : memref<32xf32, #tpu.memory_space<smem>>
    %c29 = arith.constant 29 : index
    %146 = memref.load %arg2[%c29] : memref<32xf32, #tpu.memory_space<smem>>
    %147 = vector.broadcast %145 : f32 to vector<16x128xf32>
    %148 = vector.broadcast %146 : f32 to vector<16x128xf32>
    %149 = arith.select %3, %147, %148 : vector<16x128xi1>, vector<16x128xf32>
    %150 = vector.extract_strided_slice %19 {offsets = [0, 123], sizes = [16, 5], strides = [1, 1]} : vector<16x128xf32> to vector<16x5xf32>
    %151 = vector.extract_strided_slice %19 {offsets = [0, 0], sizes = [16, 123], strides = [1, 1]} : vector<16x128xf32> to vector<16x123xf32>
    %152 = tpu.concatenate %150, %151 in 1 : vector<16x5xf32>, vector<16x123xf32> -> vector<16x128xf32>
    %153 = vector.extract_strided_slice %20 {offsets = [0, 123], sizes = [16, 5], strides = [1, 1]} : vector<16x128xf32> to vector<16x5xf32>
    %154 = vector.extract_strided_slice %20 {offsets = [0, 0], sizes = [16, 123], strides = [1, 1]} : vector<16x128xf32> to vector<16x123xf32>
    %155 = tpu.concatenate %153, %154 in 1 : vector<16x5xf32>, vector<16x123xf32> -> vector<16x128xf32>
    %156 = arith.mulf %144, %152 : vector<16x128xf32>
    %157 = arith.addf %135, %156 : vector<16x128xf32>
    %158 = arith.mulf %149, %155 : vector<16x128xf32>
    %159 = arith.subf %157, %158 : vector<16x128xf32>
    %160 = arith.mulf %144, %155 : vector<16x128xf32>
    %161 = arith.addf %139, %160 : vector<16x128xf32>
    %162 = arith.mulf %149, %152 : vector<16x128xf32>
    %163 = arith.addf %161, %162 : vector<16x128xf32>
    %c6 = arith.constant 6 : index
    %164 = memref.load %arg2[%c6] : memref<32xf32, #tpu.memory_space<smem>>
    %c22 = arith.constant 22 : index
    %165 = memref.load %arg2[%c22] : memref<32xf32, #tpu.memory_space<smem>>
    %166 = vector.broadcast %164 : f32 to vector<16x128xf32>
    %167 = vector.broadcast %165 : f32 to vector<16x128xf32>
    %168 = arith.select %3, %166, %167 : vector<16x128xi1>, vector<16x128xf32>
    %c14 = arith.constant 14 : index
    %169 = memref.load %arg2[%c14] : memref<32xf32, #tpu.memory_space<smem>>
    %c30 = arith.constant 30 : index
    %170 = memref.load %arg2[%c30] : memref<32xf32, #tpu.memory_space<smem>>
    %171 = vector.broadcast %169 : f32 to vector<16x128xf32>
    %172 = vector.broadcast %170 : f32 to vector<16x128xf32>
    %173 = arith.select %3, %171, %172 : vector<16x128xi1>, vector<16x128xf32>
    %174 = vector.extract_strided_slice %19 {offsets = [0, 122], sizes = [16, 6], strides = [1, 1]} : vector<16x128xf32> to vector<16x6xf32>
    %175 = vector.extract_strided_slice %19 {offsets = [0, 0], sizes = [16, 122], strides = [1, 1]} : vector<16x128xf32> to vector<16x122xf32>
    %176 = tpu.concatenate %174, %175 in 1 : vector<16x6xf32>, vector<16x122xf32> -> vector<16x128xf32>
    %177 = vector.extract_strided_slice %20 {offsets = [0, 122], sizes = [16, 6], strides = [1, 1]} : vector<16x128xf32> to vector<16x6xf32>
    %178 = vector.extract_strided_slice %20 {offsets = [0, 0], sizes = [16, 122], strides = [1, 1]} : vector<16x128xf32> to vector<16x122xf32>
    %179 = tpu.concatenate %177, %178 in 1 : vector<16x6xf32>, vector<16x122xf32> -> vector<16x128xf32>
    %180 = arith.mulf %168, %176 : vector<16x128xf32>
    %181 = arith.addf %159, %180 : vector<16x128xf32>
    %182 = arith.mulf %173, %179 : vector<16x128xf32>
    %183 = arith.subf %181, %182 : vector<16x128xf32>
    %184 = arith.mulf %168, %179 : vector<16x128xf32>
    %185 = arith.addf %163, %184 : vector<16x128xf32>
    %186 = arith.mulf %173, %176 : vector<16x128xf32>
    %187 = arith.addf %185, %186 : vector<16x128xf32>
    %c7 = arith.constant 7 : index
    %188 = memref.load %arg2[%c7] : memref<32xf32, #tpu.memory_space<smem>>
    %c23 = arith.constant 23 : index
    %189 = memref.load %arg2[%c23] : memref<32xf32, #tpu.memory_space<smem>>
    %190 = vector.broadcast %188 : f32 to vector<16x128xf32>
    %191 = vector.broadcast %189 : f32 to vector<16x128xf32>
    %192 = arith.select %3, %190, %191 : vector<16x128xi1>, vector<16x128xf32>
    %c15 = arith.constant 15 : index
    %193 = memref.load %arg2[%c15] : memref<32xf32, #tpu.memory_space<smem>>
    %c31 = arith.constant 31 : index
    %194 = memref.load %arg2[%c31] : memref<32xf32, #tpu.memory_space<smem>>
    %195 = vector.broadcast %193 : f32 to vector<16x128xf32>
    %196 = vector.broadcast %194 : f32 to vector<16x128xf32>
    %197 = arith.select %3, %195, %196 : vector<16x128xi1>, vector<16x128xf32>
    %198 = vector.extract_strided_slice %19 {offsets = [0, 121], sizes = [16, 7], strides = [1, 1]} : vector<16x128xf32> to vector<16x7xf32>
    %199 = vector.extract_strided_slice %19 {offsets = [0, 0], sizes = [16, 121], strides = [1, 1]} : vector<16x128xf32> to vector<16x121xf32>
    %200 = tpu.concatenate %198, %199 in 1 : vector<16x7xf32>, vector<16x121xf32> -> vector<16x128xf32>
    %201 = vector.extract_strided_slice %20 {offsets = [0, 121], sizes = [16, 7], strides = [1, 1]} : vector<16x128xf32> to vector<16x7xf32>
    %202 = vector.extract_strided_slice %20 {offsets = [0, 0], sizes = [16, 121], strides = [1, 1]} : vector<16x128xf32> to vector<16x121xf32>
    %203 = tpu.concatenate %201, %202 in 1 : vector<16x7xf32>, vector<16x121xf32> -> vector<16x128xf32>
    %204 = arith.mulf %192, %200 : vector<16x128xf32>
    %205 = arith.addf %183, %204 : vector<16x128xf32>
    %206 = arith.mulf %197, %203 : vector<16x128xf32>
    %207 = arith.subf %205, %206 : vector<16x128xf32>
    %208 = arith.mulf %192, %203 : vector<16x128xf32>
    %209 = arith.addf %187, %208 : vector<16x128xf32>
    %210 = arith.mulf %197, %200 : vector<16x128xf32>
    %211 = arith.addf %209, %210 : vector<16x128xf32>
    %212 = vector.extract_strided_slice %207 {offsets = [15, 0], sizes = [1, 128], strides = [1, 1]} : vector<16x128xf32> to vector<1x128xf32>
    %213 = vector.extract_strided_slice %207 {offsets = [0, 0], sizes = [15, 128], strides = [1, 1]} : vector<16x128xf32> to vector<15x128xf32>
    %214 = tpu.concatenate %212, %213 in 0 : vector<1x128xf32>, vector<15x128xf32> -> vector<16x128xf32>
    %215 = vector.extract_strided_slice %211 {offsets = [15, 0], sizes = [1, 128], strides = [1, 1]} : vector<16x128xf32> to vector<1x128xf32>
    %216 = vector.extract_strided_slice %211 {offsets = [0, 0], sizes = [15, 128], strides = [1, 1]} : vector<16x128xf32> to vector<15x128xf32>
    %217 = tpu.concatenate %215, %216 in 0 : vector<1x128xf32>, vector<15x128xf32> -> vector<16x128xf32>
    %218 = vector.extract_strided_slice %214 {offsets = [0, 80], sizes = [16, 48], strides = [1, 1]} : vector<16x128xf32> to vector<16x48xf32>
    %219 = vector.extract_strided_slice %214 {offsets = [0, 0], sizes = [16, 80], strides = [1, 1]} : vector<16x128xf32> to vector<16x80xf32>
    %220 = tpu.concatenate %218, %219 in 1 : vector<16x48xf32>, vector<16x80xf32> -> vector<16x128xf32>
    %221 = vector.extract_strided_slice %217 {offsets = [0, 80], sizes = [16, 48], strides = [1, 1]} : vector<16x128xf32> to vector<16x48xf32>
    %222 = vector.extract_strided_slice %217 {offsets = [0, 0], sizes = [16, 80], strides = [1, 1]} : vector<16x128xf32> to vector<16x80xf32>
    %223 = tpu.concatenate %221, %222 in 1 : vector<16x48xf32>, vector<16x80xf32> -> vector<16x128xf32>
    %c7_i32 = arith.constant 7 : i32
    %224 = vector.broadcast %c7_i32 : i32 to vector<16x128xi32>
    %225 = arith.cmpi slt, %1, %224 : vector<16x128xi32>
    %226 = arith.mulf %207, %220 : vector<16x128xf32>
    %227 = arith.mulf %211, %223 : vector<16x128xf32>
    %228 = arith.addf %226, %227 : vector<16x128xf32>
    %cst_10 = arith.constant 0.000000e+00 : f32
    %229 = vector.broadcast %cst_10 : f32 to vector<16x128xf32>
    %230 = arith.select %225, %228, %229 : vector<16x128xi1>, vector<16x128xf32>
    %231 = arith.mulf %207, %207 : vector<16x128xf32>
    %232 = arith.mulf %211, %211 : vector<16x128xf32>
    %233 = arith.addf %231, %232 : vector<16x128xf32>
    %cst_11 = arith.constant 2.000000e+00 : f32
    %234 = vector.broadcast %cst_11 : f32 to vector<16x128xf32>
    %235 = arith.mulf %234, %230 : vector<16x128xf32>
    %236 = arith.addf %233, %235 : vector<16x128xf32>
    %c0_12 = arith.constant 0 : index
    %237 = memref.load %arg1[%c0_12] : memref<1xf32, #tpu.memory_space<smem>>
    %238 = vector.broadcast %237 : f32 to vector<1x1xf32>
    %cst_13 = arith.constant -0.23025851 : f32
    %239 = vector.broadcast %cst_13 : f32 to vector<1x1xf32>
    %240 = arith.mulf %238, %239 : vector<1x1xf32>
    %241 = math.exp %240 : vector<1x1xf32>
    %c0_i32 = arith.constant 0 : i32
    %242 = vector.broadcast %c0_i32 : i32 to vector<16x128xi32>
    %243 = arith.cmpi sge, %0, %242 : vector<16x128xi32>
    %c8_i32_14 = arith.constant 8 : i32
    %244 = vector.broadcast %c8_i32_14 : i32 to vector<16x128xi32>
    %245 = arith.cmpi slt, %0, %244 : vector<16x128xi32>
    %246 = arith.andi %243, %245 : vector<16x128xi1>
    %c1_i32 = arith.constant 1 : i32
    %247 = vector.broadcast %c1_i32 : i32 to vector<16x128xi32>
    %248 = arith.cmpi sge, %0, %247 : vector<16x128xi32>
    %c5_i32 = arith.constant 5 : i32
    %249 = vector.broadcast %c5_i32 : i32 to vector<16x128xi32>
    %250 = arith.cmpi slt, %0, %249 : vector<16x128xi32>
    %251 = arith.andi %248, %250 : vector<16x128xi1>
    %cst_15 = arith.constant 0.000000e+00 : f32
    %252 = vector.broadcast %cst_15 : f32 to vector<16x128xf32>
    %253 = arith.select %251, %23, %252 : vector<16x128xi1>, vector<16x128xf32>
    %254 = vector.shape_cast %253 : vector<16x128xf32> to vector<1x16x128xf32>
    %cst_16 = arith.constant dense<0.000000e+00> : vector<1xf32>
    %255 = vector.multi_reduction <add>, %254, %cst_16 [1, 2] : vector<1x16x128xf32> to vector<1xf32>
    %256 = vector.shape_cast %255 : vector<1xf32> to vector<1x1x1xf32>
    %257 = vector.extract %256[0, 0, 0] : f32 from vector<1x1x1xf32>
    %258 = vector.broadcast %257 : f32 to vector<1x1xf32>
    %cst_17 = arith.constant 3.125000e-03 : f32
    %259 = vector.broadcast %cst_17 : f32 to vector<1x1xf32>
    %260 = arith.mulf %258, %259 : vector<1x1xf32>
    %261 = vector.shape_cast %253 : vector<16x128xf32> to vector<1x16x128xf32>
    %cst_18 = arith.constant dense<0xFF800000> : vector<1xf32>
    %262 = vector.multi_reduction <maximumf>, %261, %cst_18 [1, 2] : vector<1x16x128xf32> to vector<1xf32>
    %263 = vector.shape_cast %262 : vector<1xf32> to vector<1x1x1xf32>
    %264 = vector.extract %263[0, 0, 0] : f32 from vector<1x1x1xf32>
    %265 = vector.broadcast %264 : f32 to vector<1x1xf32>
    %266 = arith.divf %265, %260 : vector<1x1xf32>
    %cst_19 = arith.constant 0.000000e+00 : f32
    %267 = vector.broadcast %cst_19 : f32 to vector<16x128xf32>
    %268 = arith.select %246, %236, %267 : vector<16x128xi1>, vector<16x128xf32>
    %269 = vector.shape_cast %268 : vector<16x128xf32> to vector<1x16x128xf32>
    %cst_20 = arith.constant dense<0.000000e+00> : vector<1xf32>
    %270 = vector.multi_reduction <add>, %269, %cst_20 [1, 2] : vector<1x16x128xf32> to vector<1xf32>
    %271 = vector.shape_cast %270 : vector<1xf32> to vector<1x1x1xf32>
    %272 = vector.extract %271[0, 0, 0] : f32 from vector<1x1x1xf32>
    %273 = vector.broadcast %272 : f32 to vector<1x1xf32>
    %cst_21 = arith.constant 0.00245700241 : f32
    %274 = vector.broadcast %cst_21 : f32 to vector<1x1xf32>
    %275 = arith.mulf %273, %274 : vector<1x1xf32>
    %276 = arith.mulf %275, %241 : vector<1x1xf32>
    %cst_22 = arith.constant 5.000000e-01 : f32
    %277 = vector.broadcast %cst_22 : f32 to vector<1x1xf32>
    %278 = arith.mulf %276, %277 : vector<1x1xf32>
    %279 = math.sqrt %278 : vector<1x1xf32>
    %c8_i32_23 = arith.constant 8 : i32
    %280 = vector.broadcast %c8_i32_23 : i32 to vector<16x128xi32>
    %281 = arith.cmpi sge, %0, %280 : vector<16x128xi32>
    %c16_i32 = arith.constant 16 : i32
    %282 = vector.broadcast %c16_i32 : i32 to vector<16x128xi32>
    %283 = arith.cmpi slt, %0, %282 : vector<16x128xi32>
    %284 = arith.andi %281, %283 : vector<16x128xi1>
    %c9_i32 = arith.constant 9 : i32
    %285 = vector.broadcast %c9_i32 : i32 to vector<16x128xi32>
    %286 = arith.cmpi sge, %0, %285 : vector<16x128xi32>
    %c13_i32 = arith.constant 13 : i32
    %287 = vector.broadcast %c13_i32 : i32 to vector<16x128xi32>
    %288 = arith.cmpi slt, %0, %287 : vector<16x128xi32>
    %289 = arith.andi %286, %288 : vector<16x128xi1>
    %cst_24 = arith.constant 0.000000e+00 : f32
    %290 = vector.broadcast %cst_24 : f32 to vector<16x128xf32>
    %291 = arith.select %289, %23, %290 : vector<16x128xi1>, vector<16x128xf32>
    %292 = vector.shape_cast %291 : vector<16x128xf32> to vector<1x16x128xf32>
    %cst_25 = arith.constant dense<0.000000e+00> : vector<1xf32>
    %293 = vector.multi_reduction <add>, %292, %cst_25 [1, 2] : vector<1x16x128xf32> to vector<1xf32>
    %294 = vector.shape_cast %293 : vector<1xf32> to vector<1x1x1xf32>
    %295 = vector.extract %294[0, 0, 0] : f32 from vector<1x1x1xf32>
    %296 = vector.broadcast %295 : f32 to vector<1x1xf32>
    %cst_26 = arith.constant 3.125000e-03 : f32
    %297 = vector.broadcast %cst_26 : f32 to vector<1x1xf32>
    %298 = arith.mulf %296, %297 : vector<1x1xf32>
    %299 = vector.shape_cast %291 : vector<16x128xf32> to vector<1x16x128xf32>
    %cst_27 = arith.constant dense<0xFF800000> : vector<1xf32>
    %300 = vector.multi_reduction <maximumf>, %299, %cst_27 [1, 2] : vector<1x16x128xf32> to vector<1xf32>
    %301 = vector.shape_cast %300 : vector<1xf32> to vector<1x1x1xf32>
    %302 = vector.extract %301[0, 0, 0] : f32 from vector<1x1x1xf32>
    %303 = vector.broadcast %302 : f32 to vector<1x1xf32>
    %304 = arith.divf %303, %298 : vector<1x1xf32>
    %cst_28 = arith.constant 0.000000e+00 : f32
    %305 = vector.broadcast %cst_28 : f32 to vector<16x128xf32>
    %306 = arith.select %284, %236, %305 : vector<16x128xi1>, vector<16x128xf32>
    %307 = vector.shape_cast %306 : vector<16x128xf32> to vector<1x16x128xf32>
    %cst_29 = arith.constant dense<0.000000e+00> : vector<1xf32>
    %308 = vector.multi_reduction <add>, %307, %cst_29 [1, 2] : vector<1x16x128xf32> to vector<1xf32>
    %309 = vector.shape_cast %308 : vector<1xf32> to vector<1x1x1xf32>
    %310 = vector.extract %309[0, 0, 0] : f32 from vector<1x1x1xf32>
    %311 = vector.broadcast %310 : f32 to vector<1x1xf32>
    %cst_30 = arith.constant 0.00245700241 : f32
    %312 = vector.broadcast %cst_30 : f32 to vector<1x1xf32>
    %313 = arith.mulf %311, %312 : vector<1x1xf32>
    %314 = arith.mulf %313, %241 : vector<1x1xf32>
    %cst_31 = arith.constant 5.000000e-01 : f32
    %315 = vector.broadcast %cst_31 : f32 to vector<1x1xf32>
    %316 = arith.mulf %314, %315 : vector<1x1xf32>
    %317 = math.sqrt %316 : vector<1x1xf32>
    %318 = vector.extract_strided_slice %3 {offsets = [0, 0], sizes = [16, 1], strides = [1, 1]} : vector<16x128xi1> to vector<16x1xi1>
    %319 = vector.shape_cast %279 : vector<1x1xf32> to vector<1x1xf32>
    %320 = vector.broadcast %319 : vector<1x1xf32> to vector<16x1xf32>
    %321 = vector.shape_cast %317 : vector<1x1xf32> to vector<1x1xf32>
    %322 = vector.broadcast %321 : vector<1x1xf32> to vector<16x1xf32>
    %323 = arith.select %318, %320, %322 : vector<16x1xi1>, vector<16x1xf32>
    %c0_32 = arith.constant 0 : index
    %c0_33 = arith.constant 0 : index
    %324 = vector.load %arg5[%c0_32, %c0_33] : memref<2x128xf32, #tpu.memory_space<vmem>>, vector<2x128xf32>
    %c0_34 = arith.constant 0 : index
    %c0_35 = arith.constant 0 : index
    %325 = vector.load %arg6[%c0_34, %c0_35] : memref<128x128xf32, #tpu.memory_space<vmem>>, vector<128x128xf32>
    %cst_36 = arith.constant dense<0.000000e+00> : vector<2x128xf32>
    %326 = tpu.matmul %324, %325, %cst_36 {dimension_numbers = #tpu.dot_dimension_numbers<[1], [0], [0], [1], [0, 0, 1, 1], [], []>} : vector<2x128xf32>, vector<128x128xf32>, vector<2x128xf32> -> vector<2x128xf32>
    %327 = vector.extract_strided_slice %326 {offsets = [0, 0], sizes = [1, 128], strides = [1, 1]} : vector<2x128xf32> to vector<1x128xf32>
    %328 = vector.extract_strided_slice %326 {offsets = [1, 0], sizes = [1, 128], strides = [1, 1]} : vector<2x128xf32> to vector<1x128xf32>
    %329 = vector.shape_cast %327 : vector<1x128xf32> to vector<1x128xf32>
    %330 = vector.broadcast %329 : vector<1x128xf32> to vector<16x128xf32>
    %331 = vector.shape_cast %328 : vector<1x128xf32> to vector<1x128xf32>
    %332 = vector.broadcast %331 : vector<1x128xf32> to vector<16x128xf32>
    %333 = arith.select %3, %330, %332 : vector<16x128xi1>, vector<16x128xf32>
    %334 = vector.extract_strided_slice %333 {offsets = [0, 64], sizes = [16, 64], strides = [1, 1]} : vector<16x128xf32> to vector<16x64xf32>
    %335 = vector.extract_strided_slice %333 {offsets = [0, 0], sizes = [16, 64], strides = [1, 1]} : vector<16x128xf32> to vector<16x64xf32>
    %336 = tpu.concatenate %334, %335 in 1 : vector<16x64xf32>, vector<16x64xf32> -> vector<16x128xf32>
    %c64_i32 = arith.constant 64 : i32
    %337 = vector.broadcast %c64_i32 : i32 to vector<16x128xi32>
    %338 = arith.cmpi slt, %1, %337 : vector<16x128xi32>
    %339 = arith.select %338, %333, %336 : vector<16x128xi1>, vector<16x128xf32>
    %cst_37 = arith.constant 0.000000e+00 : f32
    %340 = vector.broadcast %cst_37 : f32 to vector<16x128xf32>
    %341 = arith.subf %340, %336 : vector<16x128xf32>
    %342 = arith.select %338, %341, %333 : vector<16x128xi1>, vector<16x128xf32>
    %343 = vector.extract_strided_slice %16 {offsets = [0, 64], sizes = [16, 64], strides = [1, 1]} : vector<16x128xf32> to vector<16x64xf32>
    %344 = vector.extract_strided_slice %16 {offsets = [0, 0], sizes = [16, 64], strides = [1, 1]} : vector<16x128xf32> to vector<16x64xf32>
    %345 = tpu.concatenate %343, %344 in 1 : vector<16x64xf32>, vector<16x64xf32> -> vector<16x128xf32>
    %c0_38 = arith.constant 0 : index
    %c0_39 = arith.constant 0 : index
    %346 = vector.load %arg4[%c0_38, %c0_39] : memref<16x128xf32, #tpu.memory_space<vmem>>, vector<16x128xf32>
    %c0_40 = arith.constant 0 : index
    %c0_41 = arith.constant 0 : index
    %347 = vector.load %arg6[%c0_40, %c0_41] : memref<128x128xf32, #tpu.memory_space<vmem>>, vector<128x128xf32>
    %cst_42 = arith.constant dense<0.000000e+00> : vector<16x128xf32>
    %348 = tpu.matmul %346, %347, %cst_42 {dimension_numbers = #tpu.dot_dimension_numbers<[1], [0], [0], [1], [0, 0, 1, 1], [], []>} : vector<16x128xf32>, vector<128x128xf32>, vector<16x128xf32> -> vector<16x128xf32>
    %349 = arith.mulf %339, %16 : vector<16x128xf32>
    %350 = arith.mulf %342, %345 : vector<16x128xf32>
    %351 = arith.addf %349, %350 : vector<16x128xf32>
    %352 = vector.broadcast %323 : vector<16x1xf32> to vector<16x128xf32>
    %353 = arith.mulf %352, %348 : vector<16x128xf32>
    %354 = arith.addf %351, %353 : vector<16x128xf32>
    %c0_43 = arith.constant 0 : index
    %c0_44 = arith.constant 0 : index
    %355 = vector.load %arg8[%c0_43, %c0_44] : memref<16x128xf32, #tpu.memory_space<vmem>>, vector<16x128xf32>
    tpu.vector_store %arg8[%c0_43, %c0_44], %354 {strides = array<i32>} : memref<16x128xf32, #tpu.memory_space<vmem>>, vector<16x128xf32>,
    %356 = tpu.concatenate %275, %313 in 0 : vector<1x1xf32>, vector<1x1xf32> -> vector<2x1xf32>
    %357 = tpu.concatenate %276, %314 in 0 : vector<1x1xf32>, vector<1x1xf32> -> vector<2x1xf32>
    %358 = tpu.concatenate %266, %304 in 0 : vector<1x1xf32>, vector<1x1xf32> -> vector<2x1xf32>
    %cst_45 = arith.constant 0.000000e+00 : f32
    %359 = vector.broadcast %cst_45 : f32 to vector<2x125xf32>
    %360 = tpu.concatenate %356, %357, %358, %359 in 1 : vector<2x1xf32>, vector<2x1xf32>, vector<2x1xf32>, vector<2x125xf32> -> vector<2x128xf32>
    %361 = tpu.concatenate %326, %360 in 1 : vector<2x128xf32>, vector<2x128xf32> -> vector<2x256xf32>
    %c0_46 = arith.constant 0 : index
    %c0_47 = arith.constant 0 : index
    %362 = vector.load %arg9[%c0_46, %c0_47] : memref<2x256xf32, #tpu.memory_space<vmem>>, vector<2x256xf32>
    tpu.vector_store %arg9[%c0_46, %c0_47], %361 {strides = array<i32>} : memref<2x256xf32, #tpu.memory_space<vmem>>, vector<2x256xf32>,
    return
  }
  func.func @transform_0(%arg0: i32) -> i32 {
    %c0_i32 = arith.constant 0 : i32
    %c0_i32_0 = arith.constant 0 : i32
    return %c0_i32 : i32
  }
  func.func @transform_1(%arg0: i32) -> i32 {
    %c0_i32 = arith.constant 0 : i32
    %c0_i32_0 = arith.constant 0 : i32
    return %c0_i32 : i32
  }
  func.func @transform_2(%arg0: i32) -> (i32, i32) {
    %c0_i32 = arith.constant 0 : i32
    %c0_i32_0 = arith.constant 0 : i32
    %c0_i32_1 = arith.constant 0 : i32
    return %c0_i32, %c0_i32_0 : i32, i32
  }
  func.func @transform_3(%arg0: i32) -> (i32, i32) {
    %c0_i32 = arith.constant 0 : i32
    %c0_i32_0 = arith.constant 0 : i32
    %c0_i32_1 = arith.constant 0 : i32
    return %c0_i32, %c0_i32_0 : i32, i32
  }
  func.func @transform_4(%arg0: i32) -> (i32, i32) {
    %c0_i32 = arith.constant 0 : i32
    %c0_i32_0 = arith.constant 0 : i32
    %c0_i32_1 = arith.constant 0 : i32
    return %c0_i32, %c0_i32_0 : i32, i32
  }
  func.func @transform_5(%arg0: i32) -> (i32, i32) {
    %c0_i32 = arith.constant 0 : i32
    %c0_i32_0 = arith.constant 0 : i32
    %c0_i32_1 = arith.constant 0 : i32
    return %c0_i32, %c0_i32_0 : i32, i32
  }
  func.func @transform_6(%arg0: i32) -> (i32, i32) {
    %c0_i32 = arith.constant 0 : i32
    %c0_i32_0 = arith.constant 0 : i32
    %c0_i32_1 = arith.constant 0 : i32
    return %c0_i32, %c0_i32_0 : i32, i32
  }
  func.func @transform_7(%arg0: i32) -> (i32, i32) {
    %c0_i32 = arith.constant 0 : i32
    %c0_i32_0 = arith.constant 0 : i32
    %c0_i32_1 = arith.constant 0 : i32
    return %c0_i32, %c0_i32_0 : i32, i32
  }
  func.func @transform_8(%arg0: i32) -> (i32, i32) {
    %c0_i32 = arith.constant 0 : i32
    %c0_i32_0 = arith.constant 0 : i32
    %c0_i32_1 = arith.constant 0 : i32
    return %c0_i32, %c0_i32_0 : i32, i32
  }
}

</mosaic_0001>

<llo_original>
// kernel: squeeze.9
$region0: #{squeeze.9}
  %s0 = inlined_call_operand.vmem [shape: f32[1,1,5,2,64], index: 0, kind: input, shape index: {}]
  %s1 = inlined_call_operand.vmem [shape: f32[5,128], index: 1, kind: output, shape index: {}]
  $region1: #{squeeze.9} parent=0
    #allocation0 [shape = 'u8[20480]{0}', space=vmem, size = 0x5000, scoped, tag = 'scoped mem for input reshape']
    %s3 = ssub.s32 4, 1
    %s4 = scalar_lea.vmem %s0, 8
    %v5 = vld [vmem:[%s4] sm:%s3]
    %s6 = scalar_lea.vmem [#allocation0], 32
    %7 = vst [vmem:[%s6] sm:%s3] %v5
    %s8 = scalar_lea.vmem %s0, 6
    %v9 = vld [vmem:[%s8] sm:%s3]
    %s10 = scalar_lea.vmem [#allocation0], 24
    %11 = vst [vmem:[%s10] sm:%s3] %v9
    %s12 = scalar_lea.vmem %s0, 4
    %v13 = vld [vmem:[%s12] sm:%s3]
    %s14 = scalar_lea.vmem [#allocation0], 16
    %15 = vst [vmem:[%s14] sm:%s3] %v13
    %s16 = scalar_lea.vmem %s0, 2
    %v17 = vld [vmem:[%s16] sm:%s3]
    %s18 = scalar_lea.vmem [#allocation0], 8
    %19 = vst [vmem:[%s18] sm:%s3] %v17
    %v20 = vld [vmem:[%s0] sm:%s3]
    %21 = vst [vmem:[#allocation0] sm:%s3] %v20
    %v22 = vld [vmem:[#allocation0] ss:$8 sm:$0xf]
    %s23 = scalar_lea.vmem [#allocation0], 28
    %v24 = vld [vmem:[%s23] sm:$0x10]
    %vm25 = vcmask 1044484
    %v26 = vsel %vm25, %v24, %v22
    %vm27 = vcmask 523264
    %28 = vst.msk [vmem:[%s1] sm:$0x1f] %vm27, %v26
    %s29 = scalar_lea.vmem [#allocation0], 1
    %v30 = vld [vmem:[%s29] ss:$8 sm:$0xf]
    %s31 = scalar_lea.vmem [#allocation0], 29
    %v32 = vld [vmem:[%s31] sm:$0x10]
    %vm33 = vcmask 1044484
    %v34 = vsel %vm33, %v32, %v30
    %35 = vrot.lane.b32.xlu0 %v34, 64
    %v36 = vpop.permute.xlu0 %35
    %vm37 = vcmask 1048064
    %38 = vst.msk [vmem:[%s1] sm:$0x1f] %vm37, %v36

// kernel: squeeze.8
$region0: #{squeeze.8}
  %s0 = inlined_call_operand.vmem [shape: f32[1,1,4,2,64], index: 0, kind: input, shape index: {}]
  %s1 = inlined_call_operand.vmem [shape: f32[4,128], index: 1, kind: output, shape index: {}]
  $region1: #{squeeze.8} parent=0
    #allocation0 [shape = 'u8[4096]{0}', space=vmem, size = 0x1000, scoped, tag = 'scoped mem for output reshape']
    #allocation1 [shape = 'u8[16384]{0}', space=vmem, size = 0x4000, scoped, tag = 'scoped mem for input reshape']
    %s3 = ssub.s32 4, 1
    %s4 = scalar_lea.vmem %s0, 6
    %v5 = vld [vmem:[%s4] sm:%s3]
    %s6 = scalar_lea.vmem [#allocation1], 24
    %7 = vst [vmem:[%s6] sm:%s3] %v5
    %s8 = scalar_lea.vmem %s0, 4
    %v9 = vld [vmem:[%s8] sm:%s3]
    %s10 = scalar_lea.vmem [#allocation1], 16
    %11 = vst [vmem:[%s10] sm:%s3] %v9
    %s12 = scalar_lea.vmem %s0, 2
    %v13 = vld [vmem:[%s12] sm:%s3]
    %s14 = scalar_lea.vmem [#allocation1], 8
    %15 = vst [vmem:[%s14] sm:%s3] %v13
    %v16 = vld [vmem:[%s0] sm:%s3]
    %17 = vst [vmem:[#allocation1] sm:%s3] %v16
    %v18 = vld [vmem:[#allocation1] ss:$8 sm:$0xf]
    %vm19 = vcmask 523264
    %20 = vst.msk [vmem:[#allocation0] sm:$0xf] %vm19, %v18
    %s21 = scalar_lea.vmem [#allocation1], 1
    %v22 = vld [vmem:[%s21] ss:$8 sm:$0xf]
    %23 = vrot.lane.b32.xlu0 %v22, 64
    %v24 = vpop.permute.xlu0 %23
    %vm25 = vcmask 1048064
    %26 = vst.msk [vmem:[#allocation0] sm:$0xf] %vm25, %v24
    %s28 = ssub.s32 16, 1
    %v29 = vld [vmem:[#allocation0] sm:%s28]
    %s31 = ssub.s32 16, 1
    %32 = vst [vmem:[%s1] sm:%s31] %v29

// kernel: ofdm_channel_forward.1
$region0: #{ofdm_channel_forward.1}
  #allocation0 [shape = 'u32[]', space=smem, size = 0x4, offset = 0x4, fixed_abs, tag = 'smem constant byte address 0x4 - core index']
  #allocation1 [shape = 'u32[72,128]{1,0:T(1,128)}', space=vmem, size = 0x9000, scoped, tag = 'internal scratch']
  #allocation2 [shape = 'f32[1]{0:T(128)S(6)}', space=smem, size = 0x200, scoped, tag = 'scoped memory for ofdm_channel_forward.1']
  %s0 = inlined_call_operand.<no memory space> [shape: f32[1], index: 0, kind: input, shape index: {}]
  %s1 = inlined_call_operand.vmem [shape: f32[32], index: 1, kind: input, shape index: {}]
  %s2 = inlined_call_operand.vmem [shape: f32[16,128], index: 2, kind: input, shape index: {}]
  %s3 = inlined_call_operand.vmem [shape: f32[16,128], index: 3, kind: input, shape index: {}]
  %s4 = inlined_call_operand.vmem [shape: f32[2,128], index: 4, kind: input, shape index: {}]
  %s5 = inlined_call_operand.hbm [shape: f32[128,128], index: 5, kind: input, shape index: {}]
  %s6 = inlined_call_operand.vmem [shape: f32[128,256], index: 6, kind: input, shape index: {}]
  %s7 = inlined_call_operand.vmem [shape: f32[16,128], index: 7, kind: output, shape index: {0}]
  %s8 = inlined_call_operand.vmem [shape: f32[2,256], index: 8, kind: output, shape index: {1}]
  %9 = xla_tuple %s7, %s8
  %s10 = sld [smem:[#allocation0]]
  $region54: #{ofdm_channel_forward.1} parent=0
    _
  %s12 = ssub.s32 1, %s10
  %s13 = scalar_select 0, %s12, %s10
  %14 = sst [smem:[#allocation2]] %s0
  $region1: #{ofdm_channel_forward.1} parent=0
    #allocation3 [shape = 'u8[512]{0}', space=smem, size = 0x200, scoped, tag = 'input window, operand 1, single buffered']
    #allocation4 [shape = 's32[1]{0}', space=sflag, size = 0x4, scoped, tag = 'scoped memory for ofdm_channel_forward.1']
    #allocation5 [shape = 's32[1]{0}', space=sflag, size = 0x4, scoped, tag = 'scoped memory for ofdm_channel_forward.1']
    #allocation6 [shape = 'u8[65536]{0}', space=vmem, size = 0x10000, scoped, tag = 'input window, operand 5, single buffered']
    %15 = vsyncpa [#allocation5], 0
    %16 = vsyncpa [#allocation4], 0
    // Predicated region
    $region2: #{ofdm_channel_forward.1} parent=1 // pred_check
      _
    $region3: #{ofdm_channel_forward.1} parent=1 // pred_check_branch
      %18 = sbr.rel (0) target = $region5
    $region4: #{ofdm_channel_forward.1} parent=1 // pred_region
      _
    $region5: #{ofdm_channel_forward.1} parent=1 // pred_fallthru
      _
    // Predicated region
    $region6: #{ofdm_channel_forward.1} parent=1 // pred_check
      _
    $region7: #{ofdm_channel_forward.1} parent=1 // pred_check_branch
      %20 = sbr.rel (0) target = $region9
    $region8: #{ofdm_channel_forward.1} parent=1 // pred_region
      %22 = vsyncadd [#allocation5], 0
      %s24 = sshll.u32 %s1, 4
      %s25 = int_to_ptr.vmem [resolvable:$true] %s24
      %27 = dma.vmem_to_smem %s25, 16, [#allocation3], [#allocation5]
    $region9: #{ofdm_channel_forward.1} parent=1 // pred_fallthru
      _
    // Predicated region
    $region10: #{ofdm_channel_forward.1} parent=1 // pred_check
      _
    $region11: #{ofdm_channel_forward.1} parent=1 // pred_check_branch
      %29 = sbr.rel (0) target = $region13
    $region12: #{ofdm_channel_forward.1} parent=1 // pred_region
      _
    $region13: #{ofdm_channel_forward.1} parent=1 // pred_fallthru
      _
    // Predicated region
    $region14: #{ofdm_channel_forward.1} parent=1 // pred_check
      _
    $region15: #{ofdm_channel_forward.1} parent=1 // pred_check_branch
      %31 = sbr.rel (0) target = $region17
    $region16: #{ofdm_channel_forward.1} parent=1 // pred_region
      _
    $region17: #{ofdm_channel_forward.1} parent=1 // pred_fallthru
      _
    // Predicated region
    $region18: #{ofdm_channel_forward.1} parent=1 // pred_check
      _
    $region19: #{ofdm_channel_forward.1} parent=1 // pred_check_branch
      %33 = sbr.rel (0) target = $region21
    $region20: #{ofdm_channel_forward.1} parent=1 // pred_region
      _
    $region21: #{ofdm_channel_forward.1} parent=1 // pred_fallthru
      _
    // Predicated region
    $region22: #{ofdm_channel_forward.1} parent=1 // pred_check
      _
    $region23: #{ofdm_channel_forward.1} parent=1 // pred_check_branch
      %35 = sbr.rel (0) target = $region25
    $region24: #{ofdm_channel_forward.1} parent=1 // pred_region
      %37 = vsyncadd [#allocation4], 0
      %s38 = sshll.u32 %s5, 4
      %s39 = int_to_ptr.hbm [resolvable:$true] %s38
      %s40 = sshll.u32 [#allocation6], 4
      %s41 = int_to_ptr.vmem [resolvable:$true] %s40
      %46 = dma.hbm_to_vmem [thread:$0]  %s39, 2048, %s41, [#allocation4], 128, 128, 8
    $region25: #{ofdm_channel_forward.1} parent=1 // pred_fallthru
      _
    // Predicated region
    $region26: #{ofdm_channel_forward.1} parent=1 // pred_check
      _
    $region27: #{ofdm_channel_forward.1} parent=1 // pred_check_branch
      %48 = sbr.rel (0) target = $region29
    $region28: #{ofdm_channel_forward.1} parent=1 // pred_region
      _
    $region29: #{ofdm_channel_forward.1} parent=1 // pred_fallthru
      _
    // Predicated region
    $region30: #{ofdm_channel_forward.1} parent=1 // pred_check
      _
    $region31: #{ofdm_channel_forward.1} parent=1 // pred_check_branch
      %50 = sbr.rel (0) target = $region33
    $region32: #{ofdm_channel_forward.1} parent=1 // pred_region
      %52 = dma.done [#allocation5], 16
    $region33: #{ofdm_channel_forward.1} parent=1 // pred_fallthru
      _
    // Predicated region
    $region34: #{ofdm_channel_forward.1} parent=1 // pred_check
      _
    $region35: #{ofdm_channel_forward.1} parent=1 // pred_check_branch
      %54 = sbr.rel (0) target = $region37
    $region36: #{ofdm_channel_forward.1} parent=1 // pred_region
      %56 = dma.done [#allocation4], 2048
    $region37: #{ofdm_channel_forward.1} parent=1 // pred_fallthru
      _
    %57 = sfence
    %v58 = vlaneseq
    %v59 = vshrl.u32 %v58, 7
    %v60 = vadd.s32 %v59, 8
    %v61 = vlaneseq
    %v62 = vand.u32 %v61, 127
    %vm63 = vcmp.lt.s32.totalorder %v59, 8
    %vm64 = vcmp.lt.s32.totalorder %v60, 8
    %v65 = vld [vmem:[%s2] sm:$0xff]
    %v66 = vld [vmem:[%s2 + $0x8] sm:$0xff]
    %v67 = vmul.f32 %v65, %v65
    %v68 = vmul.f32 %v66, %v66
    %69 = vadd.xlane.f32.xlu0 %v67
    %v70 = vpop.xlane.xlu0 %69
    %71 = vadd.xlane.f32.xlu0 %v68
    %v72 = vpop.xlane.xlu0 %71
    %v73 = vrcp.pop 128.0
    %v74 = vmul.f32 128.0, %v73
    %v75 = vsub.f32 1.0, %v74
    %v76 = vmul.f32 %v73, %v75
    %v77 = vadd.f32 %v73, %v76
    %vm78 = vweird.f32 %v73
    %v79 = vsel %vm78, %v73, %v77
    %v80 = vmul.f32 %v70, %v79
    %v81 = vmul.f32 %v72, %v79
    %v82 = vmax.f32 %v80, 1e-30
    %v83 = vmax.f32 %v81, 1e-30
    %v84 = vrsqrt.pop %v82
    %v85 = vmul.f32 %v84, %v82
    %v86 = vmul.f32 %v85, %v84
    %v87 = vmul.f32 0.5, %v86
    %v88 = vsub.f32 1.5, %v87
    %v89 = vmul.f32 %v84, %v88
    %vm90 = vweird.f32 %v82
    %vm91 = vweird.f32 %v84
    %vm92 = vmor %vm90, %vm91
    %v93 = vsel %vm92, %v84, %v89
    %v94 = vrsqrt.pop %v83
    %v95 = vmul.f32 %v94, %v83
    %v96 = vmul.f32 %v95, %v94
    %v97 = vmul.f32 0.5, %v96
    %v98 = vsub.f32 1.5, %v97
    %v99 = vmul.f32 %v94, %v98
    %vm100 = vweird.f32 %v83
    %vm101 = vweird.f32 %v94
    %vm102 = vmor %vm100, %vm101
    %v103 = vsel %vm102, %v94, %v99
    %v104 = vmul.f32 %v93, 0.70710677
    %v105 = vmul.f32 %v103, 0.70710677
    %v106 = vmul.f32 %v104, %v65
    %v107 = vmul.f32 %v105, %v66
    %v108 = vld [vmem:[%s6] sm:$0xff]
    %v109 = vld [vmem:[%s6 + $0x8] sm:$0xff]
    %v110 = vld [vmem:[%s6 + $0x10] sm:$0xff]
    %v111 = vld [vmem:[%s6 + $0x18] sm:$0xff]
    %v112 = vld [vmem:[%s6 + $0x20] sm:$0xff]
    %v113 = vld [vmem:[%s6 + $0x28] sm:$0xff]
    %v114 = vld [vmem:[%s6 + $0x30] sm:$0xff]
    %v115 = vld [vmem:[%s6 + $0x38] sm:$0xff]
    %v116 = vld [vmem:[%s6 + $0x40] sm:$0xff]
    %v117 = vld [vmem:[%s6 + $0x48] sm:$0xff]
    %v118 = vld [vmem:[%s6 + $0x50] sm:$0xff]
    %v119 = vld [vmem:[%s6 + $0x58] sm:$0xff]
    %v120 = vld [vmem:[%s6 + $0x60] sm:$0xff]
    %v121 = vld [vmem:[%s6 + $0x68] sm:$0xff]
    %v122 = vld [vmem:[%s6 + $0x70] sm:$0xff]
    %v123 = vld [vmem:[%s6 + $0x78] sm:$0xff]
    %v124 = vld [vmem:[%s6 + $0x80] sm:$0xff]
    %v125 = vld [vmem:[%s6 + $0x88] sm:$0xff]
    %v126 = vld [vmem:[%s6 + $0x90] sm:$0xff]
    %v127 = vld [vmem:[%s6 + $0x98] sm:$0xff]
    %v128 = vld [vmem:[%s6 + $0xa0] sm:$0xff]
    %v129 = vld [vmem:[%s6 + $0xa8] sm:$0xff]
    %v130 = vld [vmem:[%s6 + $0xb0] sm:$0xff]
    %v131 = vld [vmem:[%s6 + $0xb8] sm:$0xff]
    %v132 = vld [vmem:[%s6 + $0xc0] sm:$0xff]
    %v133 = vld [vmem:[%s6 + $0xc8] sm:$0xff]
    %v134 = vld [vmem:[%s6 + $0xd0] sm:$0xff]
    %v135 = vld [vmem:[%s6 + $0xd8] sm:$0xff]
    %v136 = vld [vmem:[%s6 + $0xe0] sm:$0xff]
    %v137 = vld [vmem:[%s6 + $0xe8] sm:$0xff]
    %v138 = vld [vmem:[%s6 + $0xf0] sm:$0xff]
    %v139 = vld [vmem:[%s6 + $0xf8] sm:$0xff]
    %140 = vmatpush.msra.mxu0 %v138
    %141 = vmatpush.msra.mxu0 %v136
    %142 = vmatpush.msra.mxu0 %v134
    %143 = vmatpush.msra.mxu0 %v132
    %144 = vmatpush.msra.mxu0 %v130
    %145 = vmatpush.msra.mxu0 %v128
    %146 = vmatpush.msra.mxu0 %v126
    %147 = vmatpush.msra.mxu0 %v124
    %148 = vmatpush.msra.mxu0 %v122
    %149 = vmatpush.msra.mxu0 %v120
    %150 = vmatpush.msra.mxu0 %v118
    %151 = vmatpush.msra.mxu0 %v116
    %152 = vmatpush.msra.mxu0 %v114
    %153 = vmatpush.msra.mxu0 %v112
    %154 = vmatpush.msra.mxu0 %v110
    %155 = vmatpush.msra.mxu0 %v108
    %156 = vmatmul.f32.gmra.mxu0 %v106
    %v157 = vpop.f32.mrf.mxu0
    %v158 = vadd.f32 0.0, %v157
    %159 = vmatmul.f32.gmra.mxu0 %v107
    %v160 = vpop.f32.mrf.mxu0
    %v161 = vadd.f32 0.0, %v160
    %162 = vdwg.mxu0
    %163 = vmatpush.msra.mxu0 %v139
    %164 = vmatpush.msra.mxu0 %v137
    %165 = vmatpush.msra.mxu0 %v135
    %166 = vmatpush.msra.mxu0 %v133
    %167 = vmatpush.msra.mxu0 %v131
    %168 = vmatpush.msra.mxu0 %v129
    %169 = vmatpush.msra.mxu0 %v127
    %170 = vmatpush.msra.mxu0 %v125
    %171 = vmatpush.msra.mxu0 %v123
    %172 = vmatpush.msra.mxu0 %v121
    %173 = vmatpush.msra.mxu0 %v119
    %174 = vmatpush.msra.mxu0 %v117
    %175 = vmatpush.msra.mxu0 %v115
    %176 = vmatpush.msra.mxu0 %v113
    %177 = vmatpush.msra.mxu0 %v111
    %178 = vmatpush.msra.mxu0 %v109
    %179 = vmatmul.f32.gmra.mxu0 %v106
    %v180 = vpop.f32.mrf.mxu0
    %v181 = vadd.f32 0.0, %v180
    %182 = vmatmul.f32.gmra.mxu0 %v107
    %v183 = vpop.f32.mrf.mxu0
    %v184 = vadd.f32 0.0, %v183
    %185 = vdwg.mxu0
    %v186 = vmul.f32 %v158, %v158
    %v187 = vmul.f32 %v161, %v161
    %v188 = vmul.f32 %v181, %v181
    %v189 = vmul.f32 %v184, %v184
    %v190 = vadd.f32 %v186, %v188
    %v191 = vadd.f32 %v187, %v189
    %s192 = sld [smem:[#allocation3]]
    %s193 = sld [smem:[#allocation3 + $0x10]]
    %v194 = vstv %s192
    %v195 = vstv %s193
    %v196 = vsel %vm63, %v194, %v195
    %v197 = vsel %vm64, %v194, %v195
    %s198 = sld [smem:[#allocation3 + $0x8]]
    %s199 = sld [smem:[#allocation3 + $0x18]]
    %v200 = vstv %s198
    %v201 = vstv %s199
    %v202 = vsel %vm63, %v200, %v201
    %v203 = vsel %vm64, %v200, %v201
    %v204 = vmul.f32 %v196, %v158
    %v205 = vmul.f32 %v197, %v161
    %v206 = vadd.f32 %v204, 0.0
    %v207 = vadd.f32 %v205, 0.0
    %v208 = vmul.f32 %v202, %v181
    %v209 = vmul.f32 %v203, %v184
    %v210 = vsub.f32 %v206, %v208
    %v211 = vsub.f32 %v207, %v209
    %v212 = vmul.f32 %v196, %v181
    %v213 = vmul.f32 %v197, %v184
    %v214 = vadd.f32 %v212, 0.0
    %v215 = vadd.f32 %v213, 0.0
    %v216 = vmul.f32 %v202, %v158
    %v217 = vmul.f32 %v203, %v161
    %v218 = vadd.f32 %v214, %v216
    %v219 = vadd.f32 %v215, %v217
    %s220 = sld [smem:[#allocation3 + $0x1]]
    %s221 = sld [smem:[#allocation3 + $0x11]]
    %v222 = vstv %s220
    %v223 = vstv %s221
    %v224 = vsel %vm63, %v222, %v223
    %v225 = vsel %vm64, %v222, %v223
    %s226 = sld [smem:[#allocation3 + $0x9]]
    %s227 = sld [smem:[#allocation3 + $0x19]]
    %v228 = vstv %s226
    %v229 = vstv %s227
    %v230 = vsel %vm63, %v228, %v229
    %v231 = vsel %vm64, %v228, %v229
    %234 = vrot.lane.b32.xlu0 %v158, 1
    %v235 = vpop.permute.xlu0 %234
    %236 = vrot.lane.b32.xlu0 %v161, 1
    %v237 = vpop.permute.xlu0 %236
    %vm240 = vcmask 7168
    %243 = vrot.lane.b32.xlu0 %v181, 1
    %v244 = vpop.permute.xlu0 %243
    %245 = vrot.lane.b32.xlu0 %v184, 1
    %v246 = vpop.permute.xlu0 %245
    %v249 = vmul.f32 %v224, %v235
    %v250 = vmul.f32 %v225, %v237
    %v251 = vadd.f32 %v210, %v249
    %v252 = vadd.f32 %v211, %v250
    %v253 = vmul.f32 %v230, %v244
    %v254 = vmul.f32 %v231, %v246
    %v255 = vsub.f32 %v251, %v253
    %v256 = vsub.f32 %v252, %v254
    %v257 = vmul.f32 %v224, %v244
    %v258 = vmul.f32 %v225, %v246
    %v259 = vadd.f32 %v218, %v257
    %v260 = vadd.f32 %v219, %v258
    %v261 = vmul.f32 %v230, %v235
    %v262 = vmul.f32 %v231, %v237
    %v263 = vadd.f32 %v259, %v261
    %v264 = vadd.f32 %v260, %v262
    %s265 = sld [smem:[#allocation3 + $0x2]]
    %s266 = sld [smem:[#allocation3 + $0x12]]
    %v267 = vstv %s265
    %v268 = vstv %s266
    %v269 = vsel %vm63, %v267, %v268
    %v270 = vsel %vm64, %v267, %v268
    %s271 = sld [smem:[#allocation3 + $0xa]]
    %s272 = sld [smem:[#allocation3 + $0x1a]]
    %v273 = vstv %s271
    %v274 = vstv %s272
    %v275 = vsel %vm63, %v273, %v274
    %v276 = vsel %vm64, %v273, %v274
    %277 = vrot.lane.b32.xlu0 %v158, 2
    %v278 = vpop.permute.xlu0 %277
    %279 = vrot.lane.b32.xlu0 %v161, 2
    %v280 = vpop.permute.xlu0 %279
    %vm283 = vcmask 15360
    %284 = vrot.lane.b32.xlu0 %v181, 2
    %v285 = vpop.permute.xlu0 %284
    %286 = vrot.lane.b32.xlu0 %v184, 2
    %v287 = vpop.permute.xlu0 %286
    %v290 = vmul.f32 %v269, %v278
    %v291 = vmul.f32 %v270, %v280
    %v292 = vadd.f32 %v255, %v290
    %v293 = vadd.f32 %v256, %v291
    %v294 = vmul.f32 %v275, %v285
    %v295 = vmul.f32 %v276, %v287
    %v296 = vsub.f32 %v292, %v294
    %v297 = vsub.f32 %v293, %v295
    %v298 = vmul.f32 %v269, %v285
    %v299 = vmul.f32 %v270, %v287
    %v300 = vadd.f32 %v263, %v298
    %v301 = vadd.f32 %v264, %v299
    %v302 = vmul.f32 %v275, %v278
    %v303 = vmul.f32 %v276, %v280
    %v304 = vadd.f32 %v300, %v302
    %v305 = vadd.f32 %v301, %v303
    %s306 = sld [smem:[#allocation3 + $0x3]]
    %s307 = sld [smem:[#allocation3 + $0x13]]
    %v308 = vstv %s306
    %v309 = vstv %s307
    %v310 = vsel %vm63, %v308, %v309
    %v311 = vsel %vm64, %v308, %v309
    %s312 = sld [smem:[#allocation3 + $0xb]]
    %s313 = sld [smem:[#allocation3 + $0x1b]]
    %v314 = vstv %s312
    %v315 = vstv %s313
    %v316 = vsel %vm63, %v314, %v315
    %v317 = vsel %vm64, %v314, %v315
    %318 = vrot.lane.b32.xlu0 %v158, 3
    %v319 = vpop.permute.xlu0 %318
    %320 = vrot.lane.b32.xlu0 %v161, 3
    %v321 = vpop.permute.xlu0 %320
    %vm324 = vcmask 23552
    %325 = vrot.lane.b32.xlu0 %v181, 3
    %v326 = vpop.permute.xlu0 %325
    %327 = vrot.lane.b32.xlu0 %v184, 3
    %v328 = vpop.permute.xlu0 %327
    %v331 = vmul.f32 %v310, %v319
    %v332 = vmul.f32 %v311, %v321
    %v333 = vadd.f32 %v296, %v331
    %v334 = vadd.f32 %v297, %v332
    %v335 = vmul.f32 %v316, %v326
    %v336 = vmul.f32 %v317, %v328
    %v337 = vsub.f32 %v333, %v335
    %v338 = vsub.f32 %v334, %v336
    %v339 = vmul.f32 %v310, %v326
    %v340 = vmul.f32 %v311, %v328
    %v341 = vadd.f32 %v304, %v339
    %v342 = vadd.f32 %v305, %v340
    %v343 = vmul.f32 %v316, %v319
    %v344 = vmul.f32 %v317, %v321
    %v345 = vadd.f32 %v341, %v343
    %v346 = vadd.f32 %v342, %v344
    %s347 = sld [smem:[#allocation3 + $0x4]]
    %s348 = sld [smem:[#allocation3 + $0x14]]
    %v349 = vstv %s347
    %v350 = vstv %s348
    %v351 = vsel %vm63, %v349, %v350
    %v352 = vsel %vm64, %v349, %v350
    %s353 = sld [smem:[#allocation3 + $0xc]]
    %s354 = sld [smem:[#allocation3 + $0x1c]]
    %v355 = vstv %s353
    %v356 = vstv %s354
    %v357 = vsel %vm63, %v355, %v356
    %v358 = vsel %vm64, %v355, %v356
    %359 = vrot.lane.b32.xlu0 %v158, 4
    %v360 = vpop.permute.xlu0 %359
    %361 = vrot.lane.b32.xlu0 %v161, 4
    %v362 = vpop.permute.xlu0 %361
    %365 = vrot.lane.b32.xlu0 %v181, 4
    %v366 = vpop.permute.xlu0 %365
    %367 = vrot.lane.b32.xlu0 %v184, 4
    %v368 = vpop.permute.xlu0 %367
    %v371 = vmul.f32 %v351, %v360
    %v372 = vmul.f32 %v352, %v362
    %v373 = vadd.f32 %v337, %v371
    %v374 = vadd.f32 %v338, %v372
    %v375 = vmul.f32 %v357, %v366
    %v376 = vmul.f32 %v358, %v368
    %v377 = vsub.f32 %v373, %v375
    %v378 = vsub.f32 %v374, %v376
    %v379 = vmul.f32 %v351, %v366
    %v380 = vmul.f32 %v352, %v368
    %v381 = vadd.f32 %v345, %v379
    %v382 = vadd.f32 %v346, %v380
    %v383 = vmul.f32 %v357, %v360
    %v384 = vmul.f32 %v358, %v362
    %v385 = vadd.f32 %v381, %v383
    %v386 = vadd.f32 %v382, %v384
    %s387 = sld [smem:[#allocation3 + $0x5]]
    %s388 = sld [smem:[#allocation3 + $0x15]]
    %v389 = vstv %s387
    %v390 = vstv %s388
    %v391 = vsel %vm63, %v389, %v390
    %v392 = vsel %vm64, %v389, %v390
    %s393 = sld [smem:[#allocation3 + $0xd]]
    %s394 = sld [smem:[#allocation3 + $0x1d]]
    %v395 = vstv %s393
    %v396 = vstv %s394
    %v397 = vsel %vm63, %v395, %v396
    %v398 = vsel %vm64, %v395, %v396
    %399 = vrot.lane.b32.xlu0 %v158, 5
    %v400 = vpop.permute.xlu0 %399
    %401 = vrot.lane.b32.xlu0 %v161, 5
    %v402 = vpop.permute.xlu0 %401
    %405 = vrot.lane.b32.xlu0 %v181, 5
    %v406 = vpop.permute.xlu0 %405
    %407 = vrot.lane.b32.xlu0 %v184, 5
    %v408 = vpop.permute.xlu0 %407
    %v411 = vmul.f32 %v391, %v400
    %v412 = vmul.f32 %v392, %v402
    %v413 = vadd.f32 %v377, %v411
    %v414 = vadd.f32 %v378, %v412
    %v415 = vmul.f32 %v397, %v406
    %v416 = vmul.f32 %v398, %v408
    %v417 = vsub.f32 %v413, %v415
    %v418 = vsub.f32 %v414, %v416
    %v419 = vmul.f32 %v391, %v406
    %v420 = vmul.f32 %v392, %v408
    %v421 = vadd.f32 %v385, %v419
    %v422 = vadd.f32 %v386, %v420
    %v423 = vmul.f32 %v397, %v400
    %v424 = vmul.f32 %v398, %v402
    %v425 = vadd.f32 %v421, %v423
    %v426 = vadd.f32 %v422, %v424
    %s427 = sld [smem:[#allocation3 + $0x6]]
    %s428 = sld [smem:[#allocation3 + $0x16]]
    %v429 = vstv %s427
    %v430 = vstv %s428
    %v431 = vsel %vm63, %v429, %v430
    %v432 = vsel %vm64, %v429, %v430
    %s433 = sld [smem:[#allocation3 + $0xe]]
    %s434 = sld [smem:[#allocation3 + $0x1e]]
    %v435 = vstv %s433
    %v436 = vstv %s434
    %v437 = vsel %vm63, %v435, %v436
    %v438 = vsel %vm64, %v435, %v436
    %439 = vrot.lane.b32.xlu0 %v158, 6
    %v440 = vpop.permute.xlu0 %439
    %441 = vrot.lane.b32.xlu0 %v161, 6
    %v442 = vpop.permute.xlu0 %441
    %445 = vrot.lane.b32.xlu0 %v181, 6
    %v446 = vpop.permute.xlu0 %445
    %447 = vrot.lane.b32.xlu0 %v184, 6
    %v448 = vpop.permute.xlu0 %447
    %v451 = vmul.f32 %v431, %v440
    %v452 = vmul.f32 %v432, %v442
    %v453 = vadd.f32 %v417, %v451
    %v454 = vadd.f32 %v418, %v452
    %v455 = vmul.f32 %v437, %v446
    %v456 = vmul.f32 %v438, %v448
    %v457 = vsub.f32 %v453, %v455
    %v458 = vsub.f32 %v454, %v456
    %v459 = vmul.f32 %v431, %v446
    %v460 = vmul.f32 %v432, %v448
    %v461 = vadd.f32 %v425, %v459
    %v462 = vadd.f32 %v426, %v460
    %v463 = vmul.f32 %v437, %v440
    %v464 = vmul.f32 %v438, %v442
    %v465 = vadd.f32 %v461, %v463
    %v466 = vadd.f32 %v462, %v464
    %s467 = sld [smem:[#allocation3 + $0x7]]
    %s468 = sld [smem:[#allocation3 + $0x17]]
    %v469 = vstv %s467
    %v470 = vstv %s468
    %v471 = vsel %vm63, %v469, %v470
    %v472 = vsel %vm64, %v469, %v470
    %s473 = sld [smem:[#allocation3 + $0xf]]
    %s474 = sld [smem:[#allocation3 + $0x1f]]
    %v475 = vstv %s473
    %v476 = vstv %s474
    %v477 = vsel %vm63, %v475, %v476
    %v478 = vsel %vm64, %v475, %v476
    %479 = vrot.lane.b32.xlu0 %v158, 7
    %v480 = vpop.permute.xlu0 %479
    %481 = vrot.lane.b32.xlu0 %v161, 7
    %v482 = vpop.permute.xlu0 %481
    %485 = vrot.lane.b32.xlu0 %v181, 7
    %v486 = vpop.permute.xlu0 %485
    %487 = vrot.lane.b32.xlu0 %v184, 7
    %v488 = vpop.permute.xlu0 %487
    %v491 = vmul.f32 %v471, %v480
    %v492 = vmul.f32 %v472, %v482
    %v493 = vadd.f32 %v457, %v491
    %v494 = vadd.f32 %v458, %v492
    %v495 = vmul.f32 %v477, %v486
    %v496 = vmul.f32 %v478, %v488
    %v497 = vsub.f32 %v493, %v495
    %v498 = vsub.f32 %v494, %v496
    %v499 = vmul.f32 %v471, %v486
    %v500 = vmul.f32 %v472, %v488
    %v501 = vadd.f32 %v465, %v499
    %v502 = vadd.f32 %v466, %v500
    %v503 = vmul.f32 %v477, %v480
    %v504 = vmul.f32 %v478, %v482
    %v505 = vadd.f32 %v501, %v503
    %v506 = vadd.f32 %v502, %v504
    %v508 = vrot.slane %v498, 7
    %vm511 = vcmask 1040384
    %v512 = vrot.slane %v497, 7
    %v513 = vsel %vm511, %v512, %v508
    %v515 = vsel %vm511, %v508, %v512
    %v517 = vrot.slane %v506, 7
    %v520 = vrot.slane %v505, 7
    %v521 = vsel %vm511, %v520, %v517
    %v523 = vsel %vm511, %v517, %v520
    %525 = vrot.lane.b32.xlu0 %v515, 48
    %v526 = vpop.permute.xlu0 %525
    %527 = vrot.lane.b32.xlu0 %v513, 48
    %v528 = vpop.permute.xlu0 %527
    %532 = vrot.lane.b32.xlu0 %v523, 48
    %v533 = vpop.permute.xlu0 %532
    %534 = vrot.lane.b32.xlu0 %v521, 48
    %v535 = vpop.permute.xlu0 %534
    %vm538 = vcmp.lt.s32.totalorder %v62, 7
    %v539 = vmul.f32 %v497, %v526
    %v540 = vmul.f32 %v498, %v528
    %v541 = vmul.f32 %v505, %v533
    %v542 = vmul.f32 %v506, %v535
    %v543 = vadd.f32 %v539, %v541
    %v544 = vadd.f32 %v540, %v542
    %v545 = vsel %vm538, %v543, 0.0
    %v546 = vsel %vm538, %v544, 0.0
    %v547 = vmul.f32 %v497, %v497
    %v548 = vmul.f32 %v498, %v498
    %v549 = vmul.f32 %v505, %v505
    %v550 = vmul.f32 %v506, %v506
    %v551 = vadd.f32 %v547, %v549
    %v552 = vadd.f32 %v548, %v550
    %v553 = vmul.f32 %v545, 2.0
    %v554 = vmul.f32 %v546, 2.0
    %v555 = vadd.f32 %v551, %v553
    %v556 = vadd.f32 %v552, %v554
    %s557 = sld [smem:[#allocation2]]
    %v558 = vstv %s557
    %v559 = vmul.f32 %v558, -0.23025851
    %v560 = vmul.f32 %v559, 1.442695
    %v561 = vpow.pop %v560
    %vm562 = vcmp.ge.s32.totalorder %v59, 0
    %vm563 = vcmp.ge.s32.totalorder %v60, 0
    %vm564 = vmand %vm562, %vm63
    %vm565 = vmand %vm563, %vm64
    %vm566 = vcmp.ge.s32.totalorder %v59, 1
    %vm567 = vcmp.ge.s32.totalorder %v60, 1
    %vm568 = vcmp.lt.s32.totalorder %v59, 5
    %vm569 = vcmp.lt.s32.totalorder %v60, 5
    %vm570 = vmand %vm566, %vm568
    %vm571 = vmand %vm567, %vm569
    %v572 = vsel %vm570, %v190, 0.0
    %v573 = vsel %vm571, %v191, 0.0
    %v574 = vadd.f32 %v572, %v573
    %575 = vadd.xlane.f32.xlu0 %v574
    %v576 = vpop.xlane.xlu0 %575
    %v577 = vrot.slane %v576, 4
    %v578 = vadd.f32 %v576, %v577
    %v579 = vrot.slane %v578, 2
    %v580 = vadd.f32 %v578, %v579
    %v581 = vrot.slane %v580, 1
    %v582 = vadd.f32 %v580, %v581
    %s583 = vtos %v582
    %v584 = vstv %s583
    %v585 = vmul.f32 %v584, 0.003125
    %v586 = vmax.f32 %v572, %v573
    %587 = vmax.xlane.f32.xlu0 %v586
    %v588 = vpop.xlane.xlu0 %587
    %v589 = vrot.slane %v588, 4
    %v590 = vmax.f32 %v588, %v589
    %v591 = vrot.slane %v590, 2
    %v592 = vmax.f32 %v590, %v591
    %v593 = vrot.slane %v592, 1
    %v594 = vmax.f32 %v592, %v593
    %s595 = vtos %v594
    %v596 = vstv %s595
    %v597 = vrcp.pop %v585
    %v598 = vmul.f32 %v585, %v597
    %v599 = vsub.f32 1.0, %v598
    %v600 = vmul.f32 %v597, %v599
    %v601 = vadd.f32 %v597, %v600
    %vm602 = vweird.f32 %v585
    %vm603 = vweird.f32 %v597
    %vm604 = vmor %vm602, %vm603
    %v605 = vsel %vm604, %v597, %v601
    %v606 = vand.u32 2147483647, %v585
    %vm607 = vcmp.eq.f32.partialorder %v606, 8.507059e+37
    %v608 = vand.u32 %v585, 2147483648
    %v609 = vor.u32 1.1754944e-38, %v608
    %v610 = vsel %vm607, %v609, %v605
    %v611 = vmul.f32 %v596, %v610
    %v612 = vsel %vm564, %v555, 0.0
    %v613 = vsel %vm565, %v556, 0.0
    %v614 = vadd.f32 %v612, %v613
    %615 = vadd.xlane.f32.xlu0 %v614
    %v616 = vpop.xlane.xlu0 %615
    %v617 = vrot.slane %v616, 4
    %v618 = vadd.f32 %v616, %v617
    %v619 = vrot.slane %v618, 2
    %v620 = vadd.f32 %v618, %v619
    %v621 = vrot.slane %v620, 1
    %v622 = vadd.f32 %v620, %v621
    %s623 = vtos %v622
    %v624 = vstv %s623
    %v625 = vmul.f32 %v624, 0.0024570024
    %v626 = vmul.f32 %v625, %v561
    %v627 = vmul.f32 %v626, 0.5
    %v628 = vrsqrt.pop %v627
    %v629 = vmul.f32 %v628, %v627
    %v630 = vmul.f32 %v629, %v628
    %v631 = vmul.f32 0.5, %v630
    %v632 = vsub.f32 1.5, %v631
    %v633 = vmul.f32 %v628, %v632
    %v634 = vmul.f32 %v627, %v633
    %vm635 = vcmp.eq.f32.partialorder %v627, inf
    %v636 = vsel %vm635, %v627, %v634
    %vm637 = vcmp.eq.f32.partialorder %v627, 0.0
    %v638 = vand.u32 %v627, 2147483648
    %v639 = vsel %vm637, %v638, %v636
    %vm640 = vcmp.ge.s32.totalorder %v59, 8
    %vm641 = vcmp.ge.s32.totalorder %v60, 8
    %vm642 = vcmp.lt.s32.totalorder %v59, 16
    %vm643 = vcmp.lt.s32.totalorder %v60, 16
    %vm644 = vmand %vm640, %vm642
    %vm645 = vmand %vm641, %vm643
    %vm646 = vcmp.ge.s32.totalorder %v59, 9
    %vm647 = vcmp.ge.s32.totalorder %v60, 9
    %vm648 = vcmp.lt.s32.totalorder %v59, 13
    %vm649 = vcmp.lt.s32.totalorder %v60, 13
    %vm650 = vmand %vm646, %vm648
    %vm651 = vmand %vm647, %vm649
    %v652 = vsel %vm650, %v190, 0.0
    %v653 = vsel %vm651, %v191, 0.0
    %v654 = vadd.f32 %v652, %v653
    %655 = vadd.xlane.f32.xlu0 %v654
    %v656 = vpop.xlane.xlu0 %655
    %v657 = vrot.slane %v656, 4
    %v658 = vadd.f32 %v656, %v657
    %v659 = vrot.slane %v658, 2
    %v660 = vadd.f32 %v658, %v659
    %v661 = vrot.slane %v660, 1
    %v662 = vadd.f32 %v660, %v661
    %s663 = vtos %v662
    %v664 = vstv %s663
    %v665 = vmul.f32 %v664, 0.003125
    %v666 = vmax.f32 %v652, %v653
    %667 = vmax.xlane.f32.xlu0 %v666
    %v668 = vpop.xlane.xlu0 %667
    %v669 = vrot.slane %v668, 4
    %v670 = vmax.f32 %v668, %v669
    %v671 = vrot.slane %v670, 2
    %v672 = vmax.f32 %v670, %v671
    %v673 = vrot.slane %v672, 1
    %v674 = vmax.f32 %v672, %v673
    %s675 = vtos %v674
    %v676 = vstv %s675
    %v677 = vrcp.pop %v665
    %v678 = vmul.f32 %v665, %v677
    %v679 = vsub.f32 1.0, %v678
    %v680 = vmul.f32 %v677, %v679
    %v681 = vadd.f32 %v677, %v680
    %vm682 = vweird.f32 %v665
    %vm683 = vweird.f32 %v677
    %vm684 = vmor %vm682, %vm683
    %v685 = vsel %vm684, %v677, %v681
    %v686 = vand.u32 2147483647, %v665
    %vm687 = vcmp.eq.f32.partialorder %v686, 8.507059e+37
    %v688 = vand.u32 %v665, 2147483648
    %v689 = vor.u32 1.1754944e-38, %v688
    %v690 = vsel %vm687, %v689, %v685
    %v691 = vmul.f32 %v676, %v690
    %v692 = vsel %vm644, %v555, 0.0
    %v693 = vsel %vm645, %v556, 0.0
    %v694 = vadd.f32 %v692, %v693
    %695 = vadd.xlane.f32.xlu0 %v694
    %v696 = vpop.xlane.xlu0 %695
    %v697 = vrot.slane %v696, 4
    %v698 = vadd.f32 %v696, %v697
    %v699 = vrot.slane %v698, 2
    %v700 = vadd.f32 %v698, %v699
    %v701 = vrot.slane %v700, 1
    %v702 = vadd.f32 %v700, %v701
    %s703 = vtos %v702
    %v704 = vstv %s703
    %v705 = vmul.f32 %v704, 0.0024570024
    %v706 = vmul.f32 %v705, %v561
    %v707 = vmul.f32 %v706, 0.5
    %v708 = vrsqrt.pop %v707
    %v709 = vmul.f32 %v708, %v707
    %v710 = vmul.f32 %v709, %v708
    %v711 = vmul.f32 0.5, %v710
    %v712 = vsub.f32 1.5, %v711
    %v713 = vmul.f32 %v708, %v712
    %v714 = vmul.f32 %v707, %v713
    %vm715 = vcmp.eq.f32.partialorder %v707, inf
    %v716 = vsel %vm715, %v707, %v714
    %vm717 = vcmp.eq.f32.partialorder %v707, 0.0
    %v718 = vand.u32 %v707, 2147483648
    %v719 = vsel %vm717, %v718, %v716
    %v720 = vsel %vm63, %v639, %v719
    %v721 = vsel %vm64, %v639, %v719
    %v722 = vld [vmem:[%s4] sm:$0x3]
    %v723 = vld [vmem:[#allocation6] sm:$0xff]
    %v724 = vld [vmem:[#allocation6 + $0x8] sm:$0xff]
    %v725 = vld [vmem:[#allocation6 + $0x10] sm:$0xff]
    %v726 = vld [vmem:[#allocation6 + $0x18] sm:$0xff]
    %v727 = vld [vmem:[#allocation6 + $0x20] sm:$0xff]
    %v728 = vld [vmem:[#allocation6 + $0x28] sm:$0xff]
    %v729 = vld [vmem:[#allocation6 + $0x30] sm:$0xff]
    %v730 = vld [vmem:[#allocation6 + $0x38] sm:$0xff]
    %v731 = vld [vmem:[#allocation6 + $0x40] sm:$0xff]
    %v732 = vld [vmem:[#allocation6 + $0x48] sm:$0xff]
    %v733 = vld [vmem:[#allocation6 + $0x50] sm:$0xff]
    %v734 = vld [vmem:[#allocation6 + $0x58] sm:$0xff]
    %v735 = vld [vmem:[#allocation6 + $0x60] sm:$0xff]
    %v736 = vld [vmem:[#allocation6 + $0x68] sm:$0xff]
    %v737 = vld [vmem:[#allocation6 + $0x70] sm:$0xff]
    %v738 = vld [vmem:[#allocation6 + $0x78] sm:$0xff]
    %739 = vmatpush.msra.mxu0 %v738
    %740 = vmatpush.msra.mxu0 %v737
    %741 = vmatpush.msra.mxu0 %v736
    %742 = vmatpush.msra.mxu0 %v735
    %743 = vmatpush.msra.mxu0 %v734
    %744 = vmatpush.msra.mxu0 %v733
    %745 = vmatpush.msra.mxu0 %v732
    %746 = vmatpush.msra.mxu0 %v731
    %747 = vmatpush.msra.mxu0 %v730
    %748 = vmatpush.msra.mxu0 %v729
    %749 = vmatpush.msra.mxu0 %v728
    %750 = vmatpush.msra.mxu0 %v727
    %751 = vmatpush.msra.mxu0 %v726
    %752 = vmatpush.msra.mxu0 %v725
    %753 = vmatpush.msra.mxu0 %v724
    %754 = vmatpush.msra.mxu0 %v723
    %755 = vmatmul.f32.gmra.mxu0 %v722
    %v756 = vpop.f32.mrf.mxu0
    %v757 = vadd.f32 0.0, %v756
    %758 = vdwg.mxu0
    %v759 = vperm.slane %v757, 0
    %v760 = vperm.slane %v757, 1
    %v761 = vsel %vm63, %v759, %v760
    %v762 = vsel %vm64, %v759, %v760
    %765 = vrot.lane.b32.xlu0 %v761, 64
    %v766 = vpop.permute.xlu0 %765
    %767 = vrot.lane.b32.xlu0 %v762, 64
    %v768 = vpop.permute.xlu0 %767
    %vm771 = vcmp.lt.s32.totalorder %v62, 64
    %v772 = vsel %vm771, %v761, %v766
    %v773 = vsel %vm771, %v762, %v768
    %v774 = vsub.f32 0.0, %v766
    %v775 = vsub.f32 0.0, %v768
    %v776 = vsel %vm771, %v774, %v761
    %v777 = vsel %vm771, %v775, %v762
    %780 = vrot.lane.b32.xlu0 %v106, 64
    %v781 = vpop.permute.xlu0 %780
    %782 = vrot.lane.b32.xlu0 %v107, 64
    %v783 = vpop.permute.xlu0 %782
    %v786 = vld [vmem:[%s3] sm:$0xff]
    %v787 = vld [vmem:[%s3 + $0x8] sm:$0xff]
    %788 = vmatpush.msra.mxu0 %v738
    %789 = vmatpush.msra.mxu0 %v737
    %790 = vmatpush.msra.mxu0 %v736
    %791 = vmatpush.msra.mxu0 %v735
    %792 = vmatpush.msra.mxu0 %v734
    %793 = vmatpush.msra.mxu0 %v733
    %794 = vmatpush.msra.mxu0 %v732
    %795 = vmatpush.msra.mxu0 %v731
    %796 = vmatpush.msra.mxu0 %v730
    %797 = vmatpush.msra.mxu0 %v729
    %798 = vmatpush.msra.mxu0 %v728
    %799 = vmatpush.msra.mxu0 %v727
    %800 = vmatpush.msra.mxu0 %v726
    %801 = vmatpush.msra.mxu0 %v725
    %802 = vmatpush.msra.mxu0 %v724
    %803 = vmatpush.msra.mxu0 %v723
    %804 = vmatmul.f32.gmra.mxu0 %v786
    %v805 = vpop.f32.mrf.mxu0
    %v806 = vadd.f32 0.0, %v805
    %807 = vmatmul.f32.gmra.mxu0 %v787
    %v808 = vpop.f32.mrf.mxu0
    %v809 = vadd.f32 0.0, %v808
    %810 = vdwg.mxu0
    %v811 = vmul.f32 %v772, %v106
    %v812 = vmul.f32 %v773, %v107
    %v813 = vmul.f32 %v776, %v781
    %v814 = vmul.f32 %v777, %v783
    %v815 = vadd.f32 %v811, %v813
    %v816 = vadd.f32 %v812, %v814
    %v817 = vmul.f32 %v720, %v806
    %v818 = vmul.f32 %v721, %v809
    %v819 = vadd.f32 %v815, %v817
    %v820 = vadd.f32 %v816, %v818
    %821 = vst [vmem:[%s7] sm:$0xff] %v819
    %822 = vst [vmem:[%s7 + $0x8] sm:$0xff] %v820
    %v823 = vsel %vm511, %v625, %v705
    %v824 = vsel %vm511, %v626, %v706
    %v825 = vsel %vm511, %v611, %v691
    %827 = vrot.lane.b32.xlu0 %v824, 1
    %v828 = vpop.permute.xlu0 %827
    %831 = vrot.lane.b32.xlu0 %v825, 2
    %v832 = vpop.permute.xlu0 %831
    %v834 = vsel %vm240, %v823, %v828
    %v835 = vsel %vm283, %v834, %v832
    %v836 = vsel %vm324, %v835, 0.0
    %v839 = vrot.slane %v836, 6
    %vm840 = vcmask 1041408
    %v841 = vsel %vm840, %v757, %v839
    %843 = vst [vmem:[%s8] sm:$0xf] %v841
    // Predicated region
    $region38: #{ofdm_channel_forward.1} parent=1 // pred_check
      _
    $region39: #{ofdm_channel_forward.1} parent=1 // pred_check_branch
      %845 = sbr.rel (0) target = $region41
    $region40: #{ofdm_channel_forward.1} parent=1 // pred_region
      _
    $region41: #{ofdm_channel_forward.1} parent=1 // pred_fallthru
      _
    // Predicated region
    $region42: #{ofdm_channel_forward.1} parent=1 // pred_check
      _
    $region43: #{ofdm_channel_forward.1} parent=1 // pred_check_branch
      %847 = sbr.rel (0) target = $region45
    $region44: #{ofdm_channel_forward.1} parent=1 // pred_region
      _
    $region45: #{ofdm_channel_forward.1} parent=1 // pred_fallthru
      _
    // Predicated region
    $region46: #{ofdm_channel_forward.1} parent=1 // pred_check
      _
    $region47: #{ofdm_channel_forward.1} parent=1 // pred_check_branch
      %849 = sbr.rel (0) target = $region49
    $region48: #{ofdm_channel_forward.1} parent=1 // pred_region
      _
    $region49: #{ofdm_channel_forward.1} parent=1 // pred_fallthru
      _
    // Predicated region
    $region50: #{ofdm_channel_forward.1} parent=1 // pred_check
      _
    $region51: #{ofdm_channel_forward.1} parent=1 // pred_check_branch
      %851 = sbr.rel (0) target = $region53
    $region52: #{ofdm_channel_forward.1} parent=1 // pred_region
      _
    $region53: #{ofdm_channel_forward.1} parent=1 // pred_fallthru
      _
    %852 = vsyncpa [#allocation4], 1
    %853 = vsyncpa [#allocation5], 1

</llo_original>
